<compile_context>
chip_gen: v5e
topology: v5e:2x2
jax: 0.10.0
libtpu: 0.0.40
codegen_flags: <defaults>
</compile_context>

<pallas_src>
import math
import numpy as np
import jax
import jax.numpy as jnp
from jax.experimental import pallas as pl
from jax.experimental.pallas import tpu as pltpu


# ----------------------------------------------------------------------------- #
# Metadata generation (mirrors AddShift_mp_module.__init__ / shuffle_idx_2_gen_pads,
# torch RNG replaced by deterministic numpy RNG).
# ----------------------------------------------------------------------------- #
def _shift(kernels):
    mink, maxk = min(kernels), max(kernels)
    nk = math.ceil(maxk / mink)
    padding = mink - 1
    mid = maxk // 2
    real_pad = [mid - i * mink - padding for i in range(nk)]
    return padding, real_pad


def build_addshift_metadata(big_kernel, small_kernel, c_out, group_in, seed=123):
    nk = math.ceil(big_kernel / small_kernel)
    padding, real_pad = _shift((small_kernel, big_kernel))
    extra_pad = padding - small_kernel // 2

    rng = np.random.default_rng(seed)
    shuffle_h = [np.concatenate([rng.permutation(nk) + i * nk for i in range(c_out)]).astype(np.int32)
                 for _ in range(group_in)]
    shuffle_v = [np.concatenate([rng.permutation(nk) + i * nk for i in range(c_out)]).astype(np.int32)
                 for _ in range(group_in)]
    shuffle_id = [(rng.integers(0, nk, c_out) + np.arange(c_out) * nk).astype(np.int32)
                  for _ in range(group_in)]

    idx_offset = np.array(real_pad * c_out, dtype=np.int32)
    pad_h, pad_v = [], []
    for g in range(group_in):
        pad_h.append(idx_offset[np.argsort(shuffle_h[g])])
        pad_v.append(idx_offset[np.argsort(shuffle_v[g])])
    pad_hv = np.stack(pad_h + pad_v).T.copy().astype(np.int32)       # (c_out*nk, 2*group_in)
    idx_identit = np.stack(shuffle_id).T.copy().astype(np.int32)     # (c_out, group_in)
    idx_out = np.repeat(np.arange(c_out), nk).astype(np.int32)
    return extra_pad, pad_hv, idx_identit, idx_out, nk, real_pad


# ----------------------------------------------------------------------------- #
# Host-side inversion: shift value -> local channel, so in-kernel slice starts are
# static and only the (cheap) first-axis channel index is dynamic.
# ----------------------------------------------------------------------------- #
def invert_shift_tables(pad_hv, idx_identit, real_pad, c_out, nk, group_in):
    khv = np.zeros((c_out, 2, group_in, nk), np.int32)   # [co, branch(h=0,v=1), g, shift j] -> k
    for co in range(c_out):
        for br in range(2):
            for g in range(group_in):
                col = g if br == 0 else group_in + g
                vals = pad_hv[co * nk:(co + 1) * nk, col]
                for j, s in enumerate(real_pad):
                    (ks,) = np.nonzero(vals == s)
                    assert ks.size == 1, "shift values must be a permutation of real_pad"
                    khv[co, br, g, j] = ks[0]
    k_id = (idx_identit.astype(np.int64) - np.arange(c_out)[:, None] * nk).astype(np.int32)
    assert (k_id >= 0).all() and (k_id < nk).all()
    # Flatten to 1-D: 2-D int32 SMEM arrays pad to (8,128)-word tiles and bloat badly.
    return khv.reshape(-1), k_id.reshape(-1)


# ----------------------------------------------------------------------------- #
# VMEM sizing helpers (tile-padded accounting).
# ----------------------------------------------------------------------------- #
def _padded_vmem_bytes(shape, itemsize):
    """Bytes a VMEM buffer of `shape` really occupies (last dim -> 128 lanes,
    second-to-last -> dtype sublane granule)."""
    shape = tuple(int(s) for s in shape)
    if len(shape) == 0:
        return itemsize
    lanes = -(-shape[-1] // 128) * 128
    if len(shape) == 1:
        return lanes * itemsize
    sub_g = 8 * max(1, 4 // itemsize)          # 8 for f32, 16 for bf16, 32 for int8
    subs = -(-shape[-2] // sub_g) * sub_g
    lead = int(np.prod(shape[:-2])) if len(shape) > 2 else 1
    return lead * subs * lanes * itemsize


def _vmem_capacity_bytes(default=64 * 2**20):
    try:
        info = pltpu.get_tpu_info()
        cap = getattr(info, "vmem_capacity_bytes", None)
        if cap:
            return int(cap)
    except Exception:
        pass
    return default                             # conservative (v7x per-core VMEM)


# ----------------------------------------------------------------------------- #
# Pallas kernel
# ----------------------------------------------------------------------------- #
def add_shift_mp_forward(x, pad_hv, idx_identit, real_pad, *, c_out, nk, group_in,
                         extra_pad, h_out, w_out, c_blk=None, max_channel_unroll=8,
                         vmem_budget_bytes=None):
    """x: (B, c_out*nk, H_in, W_in).  Returns 3 arrays (B, c_out, h_out, w_out)."""
    B, C_in, H_in, W_in = x.shape
    assert C_in == c_out * nk
    assert H_in == h_out + 2 * extra_pad and W_in == w_out + 2 * extra_pad

    shifts = [int(s) for s in real_pad]
    isz = x.dtype.itemsize
    out_dtype = x.dtype
    acc_dtype = jnp.float32

    # Static clamped crop windows, one per shift: (shift idx, src start, valid, dst).
    def windows(size_in, size_out):
        out = []
        for j, s in enumerate(shifts):
            s0 = extra_pad + s
            lo, hi = max(0, s0), min(size_in, s0 + size_out)
            if hi > lo:
                out.append((j, lo, hi - lo, lo - s0))
        return out
    h_wins = windows(W_in, w_out)   # horizontal branch: shifted column windows
    v_wins = windows(H_in, h_out)   # vertical branch:   shifted row windows

    cap = _vmem_capacity_bytes()
    if vmem_budget_bytes is None:
        vmem_budget_bytes = min(int(cap * 0.4), 48 * 2**20)

    # Channel-block auto-sizer with tile-padded accounting and a code-size cap.
    if c_blk is None:
        divs = [d for d in range(1, c_out + 1) if c_out % d == 0]
        c_blk = 1
        for cand in divs:
            if cand > max_channel_unroll:
                continue
            fp = (2 * _padded_vmem_bytes((cand * nk, H_in, W_in), isz)           # dbl-buffered in
                  + 2 * _padded_vmem_bytes((3, h_out, cand * w_out), isz))        # dbl-buffered out
            if fp <= vmem_budget_bytes:
                c_blk = cand
        # Keep >= 2 grid steps when possible so both megacore TensorCores get work.
        if B * (c_out // c_blk) < 2:
            smaller = [d for d in divs if d < c_blk]
            if smaller:
                c_blk = smaller[-1]
    assert c_out % c_blk == 0
    n_cb = c_out // c_blk

    khv_flat, kid_flat = invert_shift_tables(pad_hv, idx_identit, shifts, c_out, nk, group_in)

    rows_c = pl.ds(extra_pad, h_out)
    cols_c = pl.ds(extra_pad, w_out)

    def kernel(khv_ref, kid_ref, x_ref, out_ref):
        cb = pl.program_id(1)

        def accumulate(br, lane0, ch0, kbase, wins, horizontal):
            # One branch of one output channel, accumulated directly in the
            # VMEM-resident output block (no slab, no f32 scratch).
            full_first = bool(wins) and wins[0][3] == 0 and \
                wins[0][2] == (w_out if horizontal else h_out)
            if full_first:
                first = True
            else:
                out_ref[br, 0, 0, :, pl.ds(lane0, w_out)] = jnp.zeros(
                    (h_out, w_out), out_dtype)
                first = False
            for (j, src, valid, dst) in wins:           # all starts/sizes are static
                if horizontal:
                    srows, scols = rows_c, pl.ds(src, valid)
                    didx = (br, 0, 0, slice(None), pl.ds(lane0 + dst, valid))
                else:
                    srows, scols = pl.ds(src, valid), cols_c
                    didx = (br, 0, 0, pl.ds(dst, valid), pl.ds(lane0, w_out))
                part = x_ref[0, ch0 + khv_ref[kbase + j], srows, scols].astype(acc_dtype)
                for g in range(1, group_in):
                    part = part + x_ref[0, ch0 + khv_ref[kbase + g * nk + j], srows, scols]
                if first:
                    out_ref[didx] = part.astype(out_dtype)
                    first = False
                else:
                    out_ref[didx] = (out_ref[didx] + part).astype(out_dtype)

        for c in range(c_blk):                          # bounded unroll (<= max_channel_unroll)
            co = cb * c_blk + c                         # global output channel (traced scalar)
            lane0 = c * w_out
            ch0 = c * nk
            hbase = (co * 2) * (group_in * nk)          # hoisted SMEM index bases
            vbase = hbase + group_in * nk
            ibase = co * group_in

            accumulate(0, lane0, ch0, hbase, h_wins, True)     # horizontal branch
            accumulate(1, lane0, ch0, vbase, v_wins, False)    # vertical branch

            # identity branch: plain center crops of the selected channels
            part = x_ref[0, ch0 + kid_ref[ibase], rows_c, cols_c].astype(acc_dtype)
            for g in range(1, group_in):
                part = part + x_ref[0, ch0 + kid_ref[ibase + g], rows_c, cols_c]
            out_ref[2, 0, 0, :, pl.ds(lane0, w_out)] = part.astype(out_dtype)

    in_block = (1, c_blk * nk, H_in, W_in)
    out_block = (3, 1, 1, h_out, c_blk * w_out)
    grid_spec = pltpu.PrefetchScalarGridSpec(
        num_scalar_prefetch=2,
        grid=(B, n_cb),
        in_specs=[pl.BlockSpec(in_block, lambda b, cb, *_: (b, cb, 0, 0))],
        out_specs=pl.BlockSpec(out_block, lambda b, cb, *_: (0, b, cb, 0, 0)),
    )

    need = (2 * _padded_vmem_bytes((c_blk * nk, H_in, W_in), isz)
            + 2 * _padded_vmem_bytes((3, h_out, c_blk * w_out), isz)
            + (2 << 20))                                # headroom for internal scratch
    vmem_limit = int(min(max(2 * need, 16 * 2**20), max(int(cap * 0.6), 16 * 2**20)))

    out = pl.pallas_call(
        kernel,
        out_shape=jax.ShapeDtypeStruct((3, B, n_cb, h_out, c_blk * w_out), out_dtype),
        grid_spec=grid_spec,
        compiler_params=pltpu.CompilerParams(
            dimension_semantics=("parallel", "parallel"),
            vmem_limit_bytes=vmem_limit),
    )(jnp.asarray(khv_flat, jnp.int32), jnp.asarray(kid_flat, jnp.int32), x)

    # Un-fold the lane-packed channel axis (layout plumbing, done once in the wrapper).
    out = out.reshape(3, B, n_cb, h_out, c_blk, w_out)
    out = jnp.transpose(out, (0, 1, 2, 4, 3, 5)).reshape(3, B, c_out, h_out, w_out)
    return out[0], out[1], out[2]


# ----------------------------------------------------------------------------- #
# Pure numpy reference (same reconstructed semantics) for a sanity check.
# ----------------------------------------------------------------------------- #
def reference(x, pad_hv, idx_id, extra_pad, c_out, nk, group_in, h_out, w_out):
    B = x.shape[0]
    pad_amt = max(0, int(np.max(np.abs(pad_hv))) - extra_pad) if pad_hv.size else 0
    xp = np.pad(x, ((0, 0), (0, 0), (pad_amt, pad_amt), (pad_amt, pad_amt)))
    base = extra_pad + pad_amt
    outh = np.zeros((B, c_out, h_out, w_out), np.float32)
    outv = np.zeros_like(outh)
    outi = np.zeros_like(outh)
    for co in range(c_out):
        for g in range(group_in):
            for k in range(nk):
                ch = co * nk + k
                sh = int(pad_hv[ch, g])
                sv = int(pad_hv[ch, group_in + g])
                outh[:, co] += xp[:, ch, base:base + h_out, base + sh:base + sh + w_out]
                outv[:, co] += xp[:, ch, base + sv:base + sv + h_out, base:base + w_out]
            ci = int(idx_id[co, g])
            outi[:, co] += xp[:, ci, base:base + h_out, base:base + w_out]
    return outh, outv, outi


if __name__ == "__main__":
    # Small, module-consistent config:
    big_kernel, small_kernel = 7, 3            # nk = ceil(7/3) = 3
    c_out, group_in = 4, 2
    B, h_out, w_out = 2, 16, 16

    extra_pad, pad_hv, idx_identit, idx_out, nk, real_pad = build_addshift_metadata(
        big_kernel, small_kernel, c_out, group_in)
    c_in = c_out * nk
    H_in, W_in = h_out + 2 * extra_pad, w_out + 2 * extra_pad

    key = jax.random.PRNGKey(0)
    x = jax.random.normal(key, (B, c_in, H_in, W_in), dtype=jnp.float32)

    xh, xv, xi = add_shift_mp_forward(
        x, pad_hv, idx_identit, real_pad,
        c_out=c_out, nk=nk, group_in=group_in,
        extra_pad=extra_pad, h_out=h_out, w_out=w_out)
    jax.block_until_ready((xh, xv, xi))

    rh, rv, ri = reference(np.asarray(x), pad_hv, idx_identit,
                           extra_pad, c_out, nk, group_in, h_out, w_out)
    np.testing.assert_allclose(np.asarray(xh), rh, rtol=1e-5, atol=1e-5)
    np.testing.assert_allclose(np.asarray(xv), rv, rtol=1e-5, atol=1e-5)
    np.testing.assert_allclose(np.asarray(xi), ri, rtol=1e-5, atol=1e-5)

    # TODO(synk): AddShiftMp.backward (custom CUDA grad) is not implemented; forward only.
    print("KERNEL_OK")
</pallas_src>

<mosaic_0001>
module attributes {stable_mosaic.version = 11 : i64} {
  func.func @kernel(%arg0: i32, %arg1: i32, %arg2: memref<48xi32, #tpu.memory_space<smem>>, %arg3: memref<8xi32, #tpu.memory_space<smem>>, %arg4: memref<1x12x18x18xf32, #tpu.memory_space<vmem>>, %arg5: memref<3x1x1x16x64xf32, #tpu.memory_space<vmem>>) attributes {dimension_semantics = [#tpu.dimension_semantics<parallel>, #tpu.dimension_semantics<parallel>], iteration_bounds = array<i64: 2, 1>, scalar_prefetch = 2 : i64, scratch_operands = 0 : i64, tpu.core_type = #tpu.core_type<tc>, window_params = [{transform_indices = @transform_0, window_bounds = array<i64: 1, 12, 18, 18>}, {transform_indices = @transform_1, window_bounds = array<i64: 3, 1, 1, 16, 64>}]} {
    %c4_i32 = arith.constant 4 : i32
    %0 = arith.muli %arg1, %c4_i32 : i32
    %c0_i32 = arith.constant 0 : i32
    %1 = arith.addi %0, %c0_i32 : i32
    %c2_i32 = arith.constant 2 : i32
    %2 = arith.muli %1, %c2_i32 : i32
    %c6_i32 = arith.constant 6 : i32
    %3 = arith.muli %2, %c6_i32 : i32
    %c6_i32_0 = arith.constant 6 : i32
    %4 = arith.addi %3, %c6_i32_0 : i32
    %c2_i32_1 = arith.constant 2 : i32
    %5 = arith.muli %1, %c2_i32_1 : i32
    %c0_i32_2 = arith.constant 0 : i32
    %6 = arith.addi %3, %c0_i32_2 : i32
    %7 = arith.index_cast %6 : i32 to index
    %8 = memref.load %arg2[%7] : memref<48xi32, #tpu.memory_space<smem>>
    %c0_i32_3 = arith.constant 0 : i32
    %9 = arith.addi %c0_i32_3, %8 : i32
    %c0 = arith.constant 0 : index
    %10 = arith.index_cast %9 : i32 to index
    %c1 = arith.constant 1 : index
    %c2 = arith.constant 2 : index
    %11 = vector.load %arg4[%c0, %10, %c1, %c2] : memref<1x12x18x18xf32, #tpu.memory_space<vmem>>, vector<1x1x16x16xf32>
    %12 = vector.shape_cast %11 : vector<1x1x16x16xf32> to vector<16x16xf32>
    %c3_i32 = arith.constant 3 : i32
    %13 = arith.addi %3, %c3_i32 : i32
    %c0_i32_4 = arith.constant 0 : i32
    %14 = arith.addi %13, %c0_i32_4 : i32
    %15 = arith.index_cast %14 : i32 to index
    %16 = memref.load %arg2[%15] : memref<48xi32, #tpu.memory_space<smem>>
    %c0_i32_5 = arith.constant 0 : i32
    %17 = arith.addi %c0_i32_5, %16 : i32
    %c0_6 = arith.constant 0 : index
    %18 = arith.index_cast %17 : i32 to index
    %c1_7 = arith.constant 1 : index
    %c2_8 = arith.constant 2 : index
    %19 = vector.load %arg4[%c0_6, %18, %c1_7, %c2_8] : memref<1x12x18x18xf32, #tpu.memory_space<vmem>>, vector<1x1x16x16xf32>
    %20 = vector.shape_cast %19 : vector<1x1x16x16xf32> to vector<16x16xf32>
    %21 = arith.addf %12, %20 : vector<16x16xf32>
    %c0_9 = arith.constant 0 : index
    %c0_10 = arith.constant 0 : index
    %c0_11 = arith.constant 0 : index
    %c0_12 = arith.constant 0 : index
    %c0_13 = arith.constant 0 : index
    %22 = vector.load %arg5[%c0_9, %c0_10, %c0_11, %c0_12, %c0_13] : memref<3x1x1x16x64xf32, #tpu.memory_space<vmem>>, vector<1x1x1x16x16xf32>
    %23 = vector.shape_cast %22 : vector<1x1x1x16x16xf32> to vector<16x16xf32>
    %24 = vector.shape_cast %21 : vector<16x16xf32> to vector<1x1x1x16x16xf32>
    tpu.vector_store %arg5[%c0_9, %c0_10, %c0_11, %c0_12, %c0_13], %24 {strides = array<i32>} : memref<3x1x1x16x64xf32, #tpu.memory_space<vmem>>, vector<1x1x1x16x16xf32>,
    %c1_i32 = arith.constant 1 : i32
    %25 = arith.addi %3, %c1_i32 : i32
    %26 = arith.index_cast %25 : i32 to index
    %27 = memref.load %arg2[%26] : memref<48xi32, #tpu.memory_space<smem>>
    %c0_i32_14 = arith.constant 0 : i32
    %28 = arith.addi %c0_i32_14, %27 : i32
    %c0_15 = arith.constant 0 : index
    %29 = arith.index_cast %28 : i32 to index
    %c1_16 = arith.constant 1 : index
    %c0_17 = arith.constant 0 : index
    %30 = vector.load %arg4[%c0_15, %29, %c1_16, %c0_17] : memref<1x12x18x18xf32, #tpu.memory_space<vmem>>, vector<1x1x16x15xf32>
    %31 = vector.shape_cast %30 : vector<1x1x16x15xf32> to vector<16x15xf32>
    %c3_i32_18 = arith.constant 3 : i32
    %32 = arith.addi %3, %c3_i32_18 : i32
    %c1_i32_19 = arith.constant 1 : i32
    %33 = arith.addi %32, %c1_i32_19 : i32
    %34 = arith.index_cast %33 : i32 to index
    %35 = memref.load %arg2[%34] : memref<48xi32, #tpu.memory_space<smem>>
    %c0_i32_20 = arith.constant 0 : i32
    %36 = arith.addi %c0_i32_20, %35 : i32
    %c0_21 = arith.constant 0 : index
    %37 = arith.index_cast %36 : i32 to index
    %c1_22 = arith.constant 1 : index
    %c0_23 = arith.constant 0 : index
    %38 = vector.load %arg4[%c0_21, %37, %c1_22, %c0_23] : memref<1x12x18x18xf32, #tpu.memory_space<vmem>>, vector<1x1x16x15xf32>
    %39 = vector.shape_cast %38 : vector<1x1x16x15xf32> to vector<16x15xf32>
    %40 = arith.addf %31, %39 : vector<16x15xf32>
    %c0_24 = arith.constant 0 : index
    %c0_25 = arith.constant 0 : index
    %c0_26 = arith.constant 0 : index
    %c0_27 = arith.constant 0 : index
    %c1_28 = arith.constant 1 : index
    %41 = vector.load %arg5[%c0_24, %c0_25, %c0_26, %c0_27, %c1_28] : memref<3x1x1x16x64xf32, #tpu.memory_space<vmem>>, vector<1x1x1x16x15xf32>
    %42 = vector.shape_cast %41 : vector<1x1x1x16x15xf32> to vector<16x15xf32>
    %43 = arith.addf %42, %40 : vector<16x15xf32>
    %c0_29 = arith.constant 0 : index
    %c0_30 = arith.constant 0 : index
    %c0_31 = arith.constant 0 : index
    %c0_32 = arith.constant 0 : index
    %c1_33 = arith.constant 1 : index
    %44 = vector.load %arg5[%c0_29, %c0_30, %c0_31, %c0_32, %c1_33] : memref<3x1x1x16x64xf32, #tpu.memory_space<vmem>>, vector<1x1x1x16x15xf32>
    %45 = vector.shape_cast %44 : vector<1x1x1x16x15xf32> to vector<16x15xf32>
    %46 = vector.shape_cast %43 : vector<16x15xf32> to vector<1x1x1x16x15xf32>
    tpu.vector_store %arg5[%c0_29, %c0_30, %c0_31, %c0_32, %c1_33], %46 {strides = array<i32>} : memref<3x1x1x16x64xf32, #tpu.memory_space<vmem>>, vector<1x1x1x16x15xf32>,
    %c2_i32_34 = arith.constant 2 : i32
    %47 = arith.addi %3, %c2_i32_34 : i32
    %48 = arith.index_cast %47 : i32 to index
    %49 = memref.load %arg2[%48] : memref<48xi32, #tpu.memory_space<smem>>
    %c0_i32_35 = arith.constant 0 : i32
    %50 = arith.addi %c0_i32_35, %49 : i32
    %c0_36 = arith.constant 0 : index
    %51 = arith.index_cast %50 : i32 to index
    %c1_37 = arith.constant 1 : index
    %c0_38 = arith.constant 0 : index
    %52 = vector.load %arg4[%c0_36, %51, %c1_37, %c0_38] : memref<1x12x18x18xf32, #tpu.memory_space<vmem>>, vector<1x1x16x12xf32>
    %53 = vector.shape_cast %52 : vector<1x1x16x12xf32> to vector<16x12xf32>
    %c3_i32_39 = arith.constant 3 : i32
    %54 = arith.addi %3, %c3_i32_39 : i32
    %c2_i32_40 = arith.constant 2 : i32
    %55 = arith.addi %54, %c2_i32_40 : i32
    %56 = arith.index_cast %55 : i32 to index
    %57 = memref.load %arg2[%56] : memref<48xi32, #tpu.memory_space<smem>>
    %c0_i32_41 = arith.constant 0 : i32
    %58 = arith.addi %c0_i32_41, %57 : i32
    %c0_42 = arith.constant 0 : index
    %59 = arith.index_cast %58 : i32 to index
    %c1_43 = arith.constant 1 : index
    %c0_44 = arith.constant 0 : index
    %60 = vector.load %arg4[%c0_42, %59, %c1_43, %c0_44] : memref<1x12x18x18xf32, #tpu.memory_space<vmem>>, vector<1x1x16x12xf32>
    %61 = vector.shape_cast %60 : vector<1x1x16x12xf32> to vector<16x12xf32>
    %62 = arith.addf %53, %61 : vector<16x12xf32>
    %c0_45 = arith.constant 0 : index
    %c0_46 = arith.constant 0 : index
    %c0_47 = arith.constant 0 : index
    %c0_48 = arith.constant 0 : index
    %c4 = arith.constant 4 : index
    %63 = vector.load %arg5[%c0_45, %c0_46, %c0_47, %c0_48, %c4] : memref<3x1x1x16x64xf32, #tpu.memory_space<vmem>>, vector<1x1x1x16x12xf32>
    %64 = vector.shape_cast %63 : vector<1x1x1x16x12xf32> to vector<16x12xf32>
    %65 = arith.addf %64, %62 : vector<16x12xf32>
    %c0_49 = arith.constant 0 : index
    %c0_50 = arith.constant 0 : index
    %c0_51 = arith.constant 0 : index
    %c0_52 = arith.constant 0 : index
    %c4_53 = arith.constant 4 : index
    %66 = vector.load %arg5[%c0_49, %c0_50, %c0_51, %c0_52, %c4_53] : memref<3x1x1x16x64xf32, #tpu.memory_space<vmem>>, vector<1x1x1x16x12xf32>
    %67 = vector.shape_cast %66 : vector<1x1x1x16x12xf32> to vector<16x12xf32>
    %68 = vector.shape_cast %65 : vector<16x12xf32> to vector<1x1x1x16x12xf32>
    tpu.vector_store %arg5[%c0_49, %c0_50, %c0_51, %c0_52, %c4_53], %68 {strides = array<i32>} : memref<3x1x1x16x64xf32, #tpu.memory_space<vmem>>, vector<1x1x1x16x12xf32>,
    %c0_i32_54 = arith.constant 0 : i32
    %69 = arith.addi %4, %c0_i32_54 : i32
    %70 = arith.index_cast %69 : i32 to index
    %71 = memref.load %arg2[%70] : memref<48xi32, #tpu.memory_space<smem>>
    %c0_i32_55 = arith.constant 0 : i32
    %72 = arith.addi %c0_i32_55, %71 : i32
    %c0_56 = arith.constant 0 : index
    %73 = arith.index_cast %72 : i32 to index
    %c2_57 = arith.constant 2 : index
    %c1_58 = arith.constant 1 : index
    %74 = vector.load %arg4[%c0_56, %73, %c2_57, %c1_58] : memref<1x12x18x18xf32, #tpu.memory_space<vmem>>, vector<1x1x16x16xf32>
    %75 = vector.shape_cast %74 : vector<1x1x16x16xf32> to vector<16x16xf32>
    %c3_i32_59 = arith.constant 3 : i32
    %76 = arith.addi %4, %c3_i32_59 : i32
    %c0_i32_60 = arith.constant 0 : i32
    %77 = arith.addi %76, %c0_i32_60 : i32
    %78 = arith.index_cast %77 : i32 to index
    %79 = memref.load %arg2[%78] : memref<48xi32, #tpu.memory_space<smem>>
    %c0_i32_61 = arith.constant 0 : i32
    %80 = arith.addi %c0_i32_61, %79 : i32
    %c0_62 = arith.constant 0 : index
    %81 = arith.index_cast %80 : i32 to index
    %c2_63 = arith.constant 2 : index
    %c1_64 = arith.constant 1 : index
    %82 = vector.load %arg4[%c0_62, %81, %c2_63, %c1_64] : memref<1x12x18x18xf32, #tpu.memory_space<vmem>>, vector<1x1x16x16xf32>
    %83 = vector.shape_cast %82 : vector<1x1x16x16xf32> to vector<16x16xf32>
    %84 = arith.addf %75, %83 : vector<16x16xf32>
    %c1_65 = arith.constant 1 : index
    %c0_66 = arith.constant 0 : index
    %c0_67 = arith.constant 0 : index
    %c0_68 = arith.constant 0 : index
    %c0_69 = arith.constant 0 : index
    %85 = vector.load %arg5[%c1_65, %c0_66, %c0_67, %c0_68, %c0_69] : memref<3x1x1x16x64xf32, #tpu.memory_space<vmem>>, vector<1x1x1x16x16xf32>
    %86 = vector.shape_cast %85 : vector<1x1x1x16x16xf32> to vector<16x16xf32>
    %87 = vector.shape_cast %84 : vector<16x16xf32> to vector<1x1x1x16x16xf32>
    tpu.vector_store %arg5[%c1_65, %c0_66, %c0_67, %c0_68, %c0_69], %87 {strides = array<i32>} : memref<3x1x1x16x64xf32, #tpu.memory_space<vmem>>, vector<1x1x1x16x16xf32>,
    %c1_i32_70 = arith.constant 1 : i32
    %88 = arith.addi %4, %c1_i32_70 : i32
    %89 = arith.index_cast %88 : i32 to index
    %90 = memref.load %arg2[%89] : memref<48xi32, #tpu.memory_space<smem>>
    %c0_i32_71 = arith.constant 0 : i32
    %91 = arith.addi %c0_i32_71, %90 : i32
    %c0_72 = arith.constant 0 : index
    %92 = arith.index_cast %91 : i32 to index
    %c0_73 = arith.constant 0 : index
    %c1_74 = arith.constant 1 : index
    %93 = vector.load %arg4[%c0_72, %92, %c0_73, %c1_74] : memref<1x12x18x18xf32, #tpu.memory_space<vmem>>, vector<1x1x15x16xf32>
    %94 = vector.shape_cast %93 : vector<1x1x15x16xf32> to vector<15x16xf32>
    %c3_i32_75 = arith.constant 3 : i32
    %95 = arith.addi %4, %c3_i32_75 : i32
    %c1_i32_76 = arith.constant 1 : i32
    %96 = arith.addi %95, %c1_i32_76 : i32
    %97 = arith.index_cast %96 : i32 to index
    %98 = memref.load %arg2[%97] : memref<48xi32, #tpu.memory_space<smem>>
    %c0_i32_77 = arith.constant 0 : i32
    %99 = arith.addi %c0_i32_77, %98 : i32
    %c0_78 = arith.constant 0 : index
    %100 = arith.index_cast %99 : i32 to index
    %c0_79 = arith.constant 0 : index
    %c1_80 = arith.constant 1 : index
    %101 = vector.load %arg4[%c0_78, %100, %c0_79, %c1_80] : memref<1x12x18x18xf32, #tpu.memory_space<vmem>>, vector<1x1x15x16xf32>
    %102 = vector.shape_cast %101 : vector<1x1x15x16xf32> to vector<15x16xf32>
    %103 = arith.addf %94, %102 : vector<15x16xf32>
    %c1_81 = arith.constant 1 : index
    %c0_82 = arith.constant 0 : index
    %c0_83 = arith.constant 0 : index
    %c1_84 = arith.constant 1 : index
    %c0_85 = arith.constant 0 : index
    %104 = vector.load %arg5[%c1_81, %c0_82, %c0_83, %c1_84, %c0_85] : memref<3x1x1x16x64xf32, #tpu.memory_space<vmem>>, vector<1x1x1x15x16xf32>
    %105 = vector.shape_cast %104 : vector<1x1x1x15x16xf32> to vector<15x16xf32>
    %106 = arith.addf %105, %103 : vector<15x16xf32>
    %c1_86 = arith.constant 1 : index
    %c0_87 = arith.constant 0 : index
    %c0_88 = arith.constant 0 : index
    %c1_89 = arith.constant 1 : index
    %c0_90 = arith.constant 0 : index
    %107 = vector.load %arg5[%c1_86, %c0_87, %c0_88, %c1_89, %c0_90] : memref<3x1x1x16x64xf32, #tpu.memory_space<vmem>>, vector<1x1x1x15x16xf32>
    %108 = vector.shape_cast %107 : vector<1x1x1x15x16xf32> to vector<15x16xf32>
    %109 = vector.shape_cast %106 : vector<15x16xf32> to vector<1x1x1x15x16xf32>
    tpu.vector_store %arg5[%c1_86, %c0_87, %c0_88, %c1_89, %c0_90], %109 {strides = array<i32>} : memref<3x1x1x16x64xf32, #tpu.memory_space<vmem>>, vector<1x1x1x15x16xf32>,
    %c2_i32_91 = arith.constant 2 : i32
    %110 = arith.addi %4, %c2_i32_91 : i32
    %111 = arith.index_cast %110 : i32 to index
    %112 = memref.load %arg2[%111] : memref<48xi32, #tpu.memory_space<smem>>
    %c0_i32_92 = arith.constant 0 : i32
    %113 = arith.addi %c0_i32_92, %112 : i32
    %c0_93 = arith.constant 0 : index
    %114 = arith.index_cast %113 : i32 to index
    %c0_94 = arith.constant 0 : index
    %c1_95 = arith.constant 1 : index
    %115 = vector.load %arg4[%c0_93, %114, %c0_94, %c1_95] : memref<1x12x18x18xf32, #tpu.memory_space<vmem>>, vector<1x1x12x16xf32>
    %116 = vector.shape_cast %115 : vector<1x1x12x16xf32> to vector<12x16xf32>
    %c3_i32_96 = arith.constant 3 : i32
    %117 = arith.addi %4, %c3_i32_96 : i32
    %c2_i32_97 = arith.constant 2 : i32
    %118 = arith.addi %117, %c2_i32_97 : i32
    %119 = arith.index_cast %118 : i32 to index
    %120 = memref.load %arg2[%119] : memref<48xi32, #tpu.memory_space<smem>>
    %c0_i32_98 = arith.constant 0 : i32
    %121 = arith.addi %c0_i32_98, %120 : i32
    %c0_99 = arith.constant 0 : index
    %122 = arith.index_cast %121 : i32 to index
    %c0_100 = arith.constant 0 : index
    %c1_101 = arith.constant 1 : index
    %123 = vector.load %arg4[%c0_99, %122, %c0_100, %c1_101] : memref<1x12x18x18xf32, #tpu.memory_space<vmem>>, vector<1x1x12x16xf32>
    %124 = vector.shape_cast %123 : vector<1x1x12x16xf32> to vector<12x16xf32>
    %125 = arith.addf %116, %124 : vector<12x16xf32>
    %c1_102 = arith.constant 1 : index
    %c0_103 = arith.constant 0 : index
    %c0_104 = arith.constant 0 : index
    %c4_105 = arith.constant 4 : index
    %c0_106 = arith.constant 0 : index
    %126 = vector.load %arg5[%c1_102, %c0_103, %c0_104, %c4_105, %c0_106] : memref<3x1x1x16x64xf32, #tpu.memory_space<vmem>>, vector<1x1x1x12x16xf32>
    %127 = vector.shape_cast %126 : vector<1x1x1x12x16xf32> to vector<12x16xf32>
    %128 = arith.addf %127, %125 : vector<12x16xf32>
    %c1_107 = arith.constant 1 : index
    %c0_108 = arith.constant 0 : index
    %c0_109 = arith.constant 0 : index
    %c4_110 = arith.constant 4 : index
    %c0_111 = arith.constant 0 : index
    %129 = vector.load %arg5[%c1_107, %c0_108, %c0_109, %c4_110, %c0_111] : memref<3x1x1x16x64xf32, #tpu.memory_space<vmem>>, vector<1x1x1x12x16xf32>
    %130 = vector.shape_cast %129 : vector<1x1x1x12x16xf32> to vector<12x16xf32>
    %131 = vector.shape_cast %128 : vector<12x16xf32> to vector<1x1x1x12x16xf32>
    tpu.vector_store %arg5[%c1_107, %c0_108, %c0_109, %c4_110, %c0_111], %131 {strides = array<i32>} : memref<3x1x1x16x64xf32, #tpu.memory_space<vmem>>, vector<1x1x1x12x16xf32>,
    %132 = arith.index_cast %5 : i32 to index
    %133 = memref.load %arg3[%132] : memref<8xi32, #tpu.memory_space<smem>>
    %c0_i32_112 = arith.constant 0 : i32
    %134 = arith.addi %c0_i32_112, %133 : i32
    %c0_113 = arith.constant 0 : index
    %135 = arith.index_cast %134 : i32 to index
    %c1_114 = arith.constant 1 : index
    %c1_115 = arith.constant 1 : index
    %136 = vector.load %arg4[%c0_113, %135, %c1_114, %c1_115] : memref<1x12x18x18xf32, #tpu.memory_space<vmem>>, vector<1x1x16x16xf32>
    %137 = vector.shape_cast %136 : vector<1x1x16x16xf32> to vector<16x16xf32>
    %c1_i32_116 = arith.constant 1 : i32
    %138 = arith.addi %5, %c1_i32_116 : i32
    %139 = arith.index_cast %138 : i32 to index
    %140 = memref.load %arg3[%139] : memref<8xi32, #tpu.memory_space<smem>>
    %c0_i32_117 = arith.constant 0 : i32
    %141 = arith.addi %c0_i32_117, %140 : i32
    %c0_118 = arith.constant 0 : index
    %142 = arith.index_cast %141 : i32 to index
    %c1_119 = arith.constant 1 : index
    %c1_120 = arith.constant 1 : index
    %143 = vector.load %arg4[%c0_118, %142, %c1_119, %c1_120] : memref<1x12x18x18xf32, #tpu.memory_space<vmem>>, vector<1x1x16x16xf32>
    %144 = vector.shape_cast %143 : vector<1x1x16x16xf32> to vector<16x16xf32>
    %145 = arith.addf %137, %144 : vector<16x16xf32>
    %c2_121 = arith.constant 2 : index
    %c0_122 = arith.constant 0 : index
    %c0_123 = arith.constant 0 : index
    %c0_124 = arith.constant 0 : index
    %c0_125 = arith.constant 0 : index
    %146 = vector.load %arg5[%c2_121, %c0_122, %c0_123, %c0_124, %c0_125] : memref<3x1x1x16x64xf32, #tpu.memory_space<vmem>>, vector<1x1x1x16x16xf32>
    %147 = vector.shape_cast %146 : vector<1x1x1x16x16xf32> to vector<16x16xf32>
    %148 = vector.shape_cast %145 : vector<16x16xf32> to vector<1x1x1x16x16xf32>
    tpu.vector_store %arg5[%c2_121, %c0_122, %c0_123, %c0_124, %c0_125], %148 {strides = array<i32>} : memref<3x1x1x16x64xf32, #tpu.memory_space<vmem>>, vector<1x1x1x16x16xf32>,
    %c4_i32_126 = arith.constant 4 : i32
    %149 = arith.muli %arg1, %c4_i32_126 : i32
    %c1_i32_127 = arith.constant 1 : i32
    %150 = arith.addi %149, %c1_i32_127 : i32
    %c2_i32_128 = arith.constant 2 : i32
    %151 = arith.muli %150, %c2_i32_128 : i32
    %c6_i32_129 = arith.constant 6 : i32
    %152 = arith.muli %151, %c6_i32_129 : i32
    %c6_i32_130 = arith.constant 6 : i32
    %153 = arith.addi %152, %c6_i32_130 : i32
    %c2_i32_131 = arith.constant 2 : i32
    %154 = arith.muli %150, %c2_i32_131 : i32
    %c0_i32_132 = arith.constant 0 : i32
    %155 = arith.addi %152, %c0_i32_132 : i32
    %156 = arith.index_cast %155 : i32 to index
    %157 = memref.load %arg2[%156] : memref<48xi32, #tpu.memory_space<smem>>
    %c3_i32_133 = arith.constant 3 : i32
    %158 = arith.addi %c3_i32_133, %157 : i32
    %c0_134 = arith.constant 0 : index
    %159 = arith.index_cast %158 : i32 to index
    %c1_135 = arith.constant 1 : index
    %c2_136 = arith.constant 2 : index
    %160 = vector.load %arg4[%c0_134, %159, %c1_135, %c2_136] : memref<1x12x18x18xf32, #tpu.memory_space<vmem>>, vector<1x1x16x16xf32>
    %161 = vector.shape_cast %160 : vector<1x1x16x16xf32> to vector<16x16xf32>
    %c3_i32_137 = arith.constant 3 : i32
    %162 = arith.addi %152, %c3_i32_137 : i32
    %c0_i32_138 = arith.constant 0 : i32
    %163 = arith.addi %162, %c0_i32_138 : i32
    %164 = arith.index_cast %163 : i32 to index
    %165 = memref.load %arg2[%164] : memref<48xi32, #tpu.memory_space<smem>>
    %c3_i32_139 = arith.constant 3 : i32
    %166 = arith.addi %c3_i32_139, %165 : i32
    %c0_140 = arith.constant 0 : index
    %167 = arith.index_cast %166 : i32 to index
    %c1_141 = arith.constant 1 : index
    %c2_142 = arith.constant 2 : index
    %168 = vector.load %arg4[%c0_140, %167, %c1_141, %c2_142] : memref<1x12x18x18xf32, #tpu.memory_space<vmem>>, vector<1x1x16x16xf32>
    %169 = vector.shape_cast %168 : vector<1x1x16x16xf32> to vector<16x16xf32>
    %170 = arith.addf %161, %169 : vector<16x16xf32>
    %c0_143 = arith.constant 0 : index
    %c0_144 = arith.constant 0 : index
    %c0_145 = arith.constant 0 : index
    %c0_146 = arith.constant 0 : index
    %c16 = arith.constant 16 : index
    %171 = vector.load %arg5[%c0_143, %c0_144, %c0_145, %c0_146, %c16] : memref<3x1x1x16x64xf32, #tpu.memory_space<vmem>>, vector<1x1x1x16x16xf32>
    %172 = vector.shape_cast %171 : vector<1x1x1x16x16xf32> to vector<16x16xf32>
    %173 = vector.shape_cast %170 : vector<16x16xf32> to vector<1x1x1x16x16xf32>
    tpu.vector_store %arg5[%c0_143, %c0_144, %c0_145, %c0_146, %c16], %173 {strides = array<i32>} : memref<3x1x1x16x64xf32, #tpu.memory_space<vmem>>, vector<1x1x1x16x16xf32>,
    %c1_i32_147 = arith.constant 1 : i32
    %174 = arith.addi %152, %c1_i32_147 : i32
    %175 = arith.index_cast %174 : i32 to index
    %176 = memref.load %arg2[%175] : memref<48xi32, #tpu.memory_space<smem>>
    %c3_i32_148 = arith.constant 3 : i32
    %177 = arith.addi %c3_i32_148, %176 : i32
    %c0_149 = arith.constant 0 : index
    %178 = arith.index_cast %177 : i32 to index
    %c1_150 = arith.constant 1 : index
    %c0_151 = arith.constant 0 : index
    %179 = vector.load %arg4[%c0_149, %178, %c1_150, %c0_151] : memref<1x12x18x18xf32, #tpu.memory_space<vmem>>, vector<1x1x16x15xf32>
    %180 = vector.shape_cast %179 : vector<1x1x16x15xf32> to vector<16x15xf32>
    %c3_i32_152 = arith.constant 3 : i32
    %181 = arith.addi %152, %c3_i32_152 : i32
    %c1_i32_153 = arith.constant 1 : i32
    %182 = arith.addi %181, %c1_i32_153 : i32
    %183 = arith.index_cast %182 : i32 to index
    %184 = memref.load %arg2[%183] : memref<48xi32, #tpu.memory_space<smem>>
    %c3_i32_154 = arith.constant 3 : i32
    %185 = arith.addi %c3_i32_154, %184 : i32
    %c0_155 = arith.constant 0 : index
    %186 = arith.index_cast %185 : i32 to index
    %c1_156 = arith.constant 1 : index
    %c0_157 = arith.constant 0 : index
    %187 = vector.load %arg4[%c0_155, %186, %c1_156, %c0_157] : memref<1x12x18x18xf32, #tpu.memory_space<vmem>>, vector<1x1x16x15xf32>
    %188 = vector.shape_cast %187 : vector<1x1x16x15xf32> to vector<16x15xf32>
    %189 = arith.addf %180, %188 : vector<16x15xf32>
    %c0_158 = arith.constant 0 : index
    %c0_159 = arith.constant 0 : index
    %c0_160 = arith.constant 0 : index
    %c0_161 = arith.constant 0 : index
    %c17 = arith.constant 17 : index
    %190 = vector.load %arg5[%c0_158, %c0_159, %c0_160, %c0_161, %c17] : memref<3x1x1x16x64xf32, #tpu.memory_space<vmem>>, vector<1x1x1x16x15xf32>
    %191 = vector.shape_cast %190 : vector<1x1x1x16x15xf32> to vector<16x15xf32>
    %192 = arith.addf %191, %189 : vector<16x15xf32>
    %c0_162 = arith.constant 0 : index
    %c0_163 = arith.constant 0 : index
    %c0_164 = arith.constant 0 : index
    %c0_165 = arith.constant 0 : index
    %c17_166 = arith.constant 17 : index
    %193 = vector.load %arg5[%c0_162, %c0_163, %c0_164, %c0_165, %c17_166] : memref<3x1x1x16x64xf32, #tpu.memory_space<vmem>>, vector<1x1x1x16x15xf32>
    %194 = vector.shape_cast %193 : vector<1x1x1x16x15xf32> to vector<16x15xf32>
    %195 = vector.shape_cast %192 : vector<16x15xf32> to vector<1x1x1x16x15xf32>
    tpu.vector_store %arg5[%c0_162, %c0_163, %c0_164, %c0_165, %c17_166], %195 {strides = array<i32>} : memref<3x1x1x16x64xf32, #tpu.memory_space<vmem>>, vector<1x1x1x16x15xf32>,
    %c2_i32_167 = arith.constant 2 : i32
    %196 = arith.addi %152, %c2_i32_167 : i32
    %197 = arith.index_cast %196 : i32 to index
    %198 = memref.load %arg2[%197] : memref<48xi32, #tpu.memory_space<smem>>
    %c3_i32_168 = arith.constant 3 : i32
    %199 = arith.addi %c3_i32_168, %198 : i32
    %c0_169 = arith.constant 0 : index
    %200 = arith.index_cast %199 : i32 to index
    %c1_170 = arith.constant 1 : index
    %c0_171 = arith.constant 0 : index
    %201 = vector.load %arg4[%c0_169, %200, %c1_170, %c0_171] : memref<1x12x18x18xf32, #tpu.memory_space<vmem>>, vector<1x1x16x12xf32>
    %202 = vector.shape_cast %201 : vector<1x1x16x12xf32> to vector<16x12xf32>
    %c3_i32_172 = arith.constant 3 : i32
    %203 = arith.addi %152, %c3_i32_172 : i32
    %c2_i32_173 = arith.constant 2 : i32
    %204 = arith.addi %203, %c2_i32_173 : i32
    %205 = arith.index_cast %204 : i32 to index
    %206 = memref.load %arg2[%205] : memref<48xi32, #tpu.memory_space<smem>>
    %c3_i32_174 = arith.constant 3 : i32
    %207 = arith.addi %c3_i32_174, %206 : i32
    %c0_175 = arith.constant 0 : index
    %208 = arith.index_cast %207 : i32 to index
    %c1_176 = arith.constant 1 : index
    %c0_177 = arith.constant 0 : index
    %209 = vector.load %arg4[%c0_175, %208, %c1_176, %c0_177] : memref<1x12x18x18xf32, #tpu.memory_space<vmem>>, vector<1x1x16x12xf32>
    %210 = vector.shape_cast %209 : vector<1x1x16x12xf32> to vector<16x12xf32>
    %211 = arith.addf %202, %210 : vector<16x12xf32>
    %c0_178 = arith.constant 0 : index
    %c0_179 = arith.constant 0 : index
    %c0_180 = arith.constant 0 : index
    %c0_181 = arith.constant 0 : index
    %c20 = arith.constant 20 : index
    %212 = vector.load %arg5[%c0_178, %c0_179, %c0_180, %c0_181, %c20] : memref<3x1x1x16x64xf32, #tpu.memory_space<vmem>>, vector<1x1x1x16x12xf32>
    %213 = vector.shape_cast %212 : vector<1x1x1x16x12xf32> to vector<16x12xf32>
    %214 = arith.addf %213, %211 : vector<16x12xf32>
    %c0_182 = arith.constant 0 : index
    %c0_183 = arith.constant 0 : index
    %c0_184 = arith.constant 0 : index
    %c0_185 = arith.constant 0 : index
    %c20_186 = arith.constant 20 : index
    %215 = vector.load %arg5[%c0_182, %c0_183, %c0_184, %c0_185, %c20_186] : memref<3x1x1x16x64xf32, #tpu.memory_space<vmem>>, vector<1x1x1x16x12xf32>
    %216 = vector.shape_cast %215 : vector<1x1x1x16x12xf32> to vector<16x12xf32>
    %217 = vector.shape_cast %214 : vector<16x12xf32> to vector<1x1x1x16x12xf32>
    tpu.vector_store %arg5[%c0_182, %c0_183, %c0_184, %c0_185, %c20_186], %217 {strides = array<i32>} : memref<3x1x1x16x64xf32, #tpu.memory_space<vmem>>, vector<1x1x1x16x12xf32>,
    %c0_i32_187 = arith.constant 0 : i32
    %218 = arith.addi %153, %c0_i32_187 : i32
    %219 = arith.index_cast %218 : i32 to index
    %220 = memref.load %arg2[%219] : memref<48xi32, #tpu.memory_space<smem>>
    %c3_i32_188 = arith.constant 3 : i32
    %221 = arith.addi %c3_i32_188, %220 : i32
    %c0_189 = arith.constant 0 : index
    %222 = arith.index_cast %221 : i32 to index
    %c2_190 = arith.constant 2 : index
    %c1_191 = arith.constant 1 : index
    %223 = vector.load %arg4[%c0_189, %222, %c2_190, %c1_191] : memref<1x12x18x18xf32, #tpu.memory_space<vmem>>, vector<1x1x16x16xf32>
    %224 = vector.shape_cast %223 : vector<1x1x16x16xf32> to vector<16x16xf32>
    %c3_i32_192 = arith.constant 3 : i32
    %225 = arith.addi %153, %c3_i32_192 : i32
    %c0_i32_193 = arith.constant 0 : i32
    %226 = arith.addi %225, %c0_i32_193 : i32
    %227 = arith.index_cast %226 : i32 to index
    %228 = memref.load %arg2[%227] : memref<48xi32, #tpu.memory_space<smem>>
    %c3_i32_194 = arith.constant 3 : i32
    %229 = arith.addi %c3_i32_194, %228 : i32
    %c0_195 = arith.constant 0 : index
    %230 = arith.index_cast %229 : i32 to index
    %c2_196 = arith.constant 2 : index
    %c1_197 = arith.constant 1 : index
    %231 = vector.load %arg4[%c0_195, %230, %c2_196, %c1_197] : memref<1x12x18x18xf32, #tpu.memory_space<vmem>>, vector<1x1x16x16xf32>
    %232 = vector.shape_cast %231 : vector<1x1x16x16xf32> to vector<16x16xf32>
    %233 = arith.addf %224, %232 : vector<16x16xf32>
    %c1_198 = arith.constant 1 : index
    %c0_199 = arith.constant 0 : index
    %c0_200 = arith.constant 0 : index
    %c0_201 = arith.constant 0 : index
    %c16_202 = arith.constant 16 : index
    %234 = vector.load %arg5[%c1_198, %c0_199, %c0_200, %c0_201, %c16_202] : memref<3x1x1x16x64xf32, #tpu.memory_space<vmem>>, vector<1x1x1x16x16xf32>
    %235 = vector.shape_cast %234 : vector<1x1x1x16x16xf32> to vector<16x16xf32>
    %236 = vector.shape_cast %233 : vector<16x16xf32> to vector<1x1x1x16x16xf32>
    tpu.vector_store %arg5[%c1_198, %c0_199, %c0_200, %c0_201, %c16_202], %236 {strides = array<i32>} : memref<3x1x1x16x64xf32, #tpu.memory_space<vmem>>, vector<1x1x1x16x16xf32>,
    %c1_i32_203 = arith.constant 1 : i32
    %237 = arith.addi %153, %c1_i32_203 : i32
    %238 = arith.index_cast %237 : i32 to index
    %239 = memref.load %arg2[%238] : memref<48xi32, #tpu.memory_space<smem>>
    %c3_i32_204 = arith.constant 3 : i32
    %240 = arith.addi %c3_i32_204, %239 : i32
    %c0_205 = arith.constant 0 : index
    %241 = arith.index_cast %240 : i32 to index
    %c0_206 = arith.constant 0 : index
    %c1_207 = arith.constant 1 : index
    %242 = vector.load %arg4[%c0_205, %241, %c0_206, %c1_207] : memref<1x12x18x18xf32, #tpu.memory_space<vmem>>, vector<1x1x15x16xf32>
    %243 = vector.shape_cast %242 : vector<1x1x15x16xf32> to vector<15x16xf32>
    %c3_i32_208 = arith.constant 3 : i32
    %244 = arith.addi %153, %c3_i32_208 : i32
    %c1_i32_209 = arith.constant 1 : i32
    %245 = arith.addi %244, %c1_i32_209 : i32
    %246 = arith.index_cast %245 : i32 to index
    %247 = memref.load %arg2[%246] : memref<48xi32, #tpu.memory_space<smem>>
    %c3_i32_210 = arith.constant 3 : i32
    %248 = arith.addi %c3_i32_210, %247 : i32
    %c0_211 = arith.constant 0 : index
    %249 = arith.index_cast %248 : i32 to index
    %c0_212 = arith.constant 0 : index
    %c1_213 = arith.constant 1 : index
    %250 = vector.load %arg4[%c0_211, %249, %c0_212, %c1_213] : memref<1x12x18x18xf32, #tpu.memory_space<vmem>>, vector<1x1x15x16xf32>
    %251 = vector.shape_cast %250 : vector<1x1x15x16xf32> to vector<15x16xf32>
    %252 = arith.addf %243, %251 : vector<15x16xf32>
    %c1_214 = arith.constant 1 : index
    %c0_215 = arith.constant 0 : index
    %c0_216 = arith.constant 0 : index
    %c1_217 = arith.constant 1 : index
    %c16_218 = arith.constant 16 : index
    %253 = vector.load %arg5[%c1_214, %c0_215, %c0_216, %c1_217, %c16_218] : memref<3x1x1x16x64xf32, #tpu.memory_space<vmem>>, vector<1x1x1x15x16xf32>
    %254 = vector.shape_cast %253 : vector<1x1x1x15x16xf32> to vector<15x16xf32>
    %255 = arith.addf %254, %252 : vector<15x16xf32>
    %c1_219 = arith.constant 1 : index
    %c0_220 = arith.constant 0 : index
    %c0_221 = arith.constant 0 : index
    %c1_222 = arith.constant 1 : index
    %c16_223 = arith.constant 16 : index
    %256 = vector.load %arg5[%c1_219, %c0_220, %c0_221, %c1_222, %c16_223] : memref<3x1x1x16x64xf32, #tpu.memory_space<vmem>>, vector<1x1x1x15x16xf32>
    %257 = vector.shape_cast %256 : vector<1x1x1x15x16xf32> to vector<15x16xf32>
    %258 = vector.shape_cast %255 : vector<15x16xf32> to vector<1x1x1x15x16xf32>
    tpu.vector_store %arg5[%c1_219, %c0_220, %c0_221, %c1_222, %c16_223], %258 {strides = array<i32>} : memref<3x1x1x16x64xf32, #tpu.memory_space<vmem>>, vector<1x1x1x15x16xf32>,
    %c2_i32_224 = arith.constant 2 : i32
    %259 = arith.addi %153, %c2_i32_224 : i32
    %260 = arith.index_cast %259 : i32 to index
    %261 = memref.load %arg2[%260] : memref<48xi32, #tpu.memory_space<smem>>
    %c3_i32_225 = arith.constant 3 : i32
    %262 = arith.addi %c3_i32_225, %261 : i32
    %c0_226 = arith.constant 0 : index
    %263 = arith.index_cast %262 : i32 to index
    %c0_227 = arith.constant 0 : index
    %c1_228 = arith.constant 1 : index
    %264 = vector.load %arg4[%c0_226, %263, %c0_227, %c1_228] : memref<1x12x18x18xf32, #tpu.memory_space<vmem>>, vector<1x1x12x16xf32>
    %265 = vector.shape_cast %264 : vector<1x1x12x16xf32> to vector<12x16xf32>
    %c3_i32_229 = arith.constant 3 : i32
    %266 = arith.addi %153, %c3_i32_229 : i32
    %c2_i32_230 = arith.constant 2 : i32
    %267 = arith.addi %266, %c2_i32_230 : i32
    %268 = arith.index_cast %267 : i32 to index
    %269 = memref.load %arg2[%268] : memref<48xi32, #tpu.memory_space<smem>>
    %c3_i32_231 = arith.constant 3 : i32
    %270 = arith.addi %c3_i32_231, %269 : i32
    %c0_232 = arith.constant 0 : index
    %271 = arith.index_cast %270 : i32 to index
    %c0_233 = arith.constant 0 : index
    %c1_234 = arith.constant 1 : index
    %272 = vector.load %arg4[%c0_232, %271, %c0_233, %c1_234] : memref<1x12x18x18xf32, #tpu.memory_space<vmem>>, vector<1x1x12x16xf32>
    %273 = vector.shape_cast %272 : vector<1x1x12x16xf32> to vector<12x16xf32>
    %274 = arith.addf %265, %273 : vector<12x16xf32>
    %c1_235 = arith.constant 1 : index
    %c0_236 = arith.constant 0 : index
    %c0_237 = arith.constant 0 : index
    %c4_238 = arith.constant 4 : index
    %c16_239 = arith.constant 16 : index
    %275 = vector.load %arg5[%c1_235, %c0_236, %c0_237, %c4_238, %c16_239] : memref<3x1x1x16x64xf32, #tpu.memory_space<vmem>>, vector<1x1x1x12x16xf32>
    %276 = vector.shape_cast %275 : vector<1x1x1x12x16xf32> to vector<12x16xf32>
    %277 = arith.addf %276, %274 : vector<12x16xf32>
    %c1_240 = arith.constant 1 : index
    %c0_241 = arith.constant 0 : index
    %c0_242 = arith.constant 0 : index
    %c4_243 = arith.constant 4 : index
    %c16_244 = arith.constant 16 : index
    %278 = vector.load %arg5[%c1_240, %c0_241, %c0_242, %c4_243, %c16_244] : memref<3x1x1x16x64xf32, #tpu.memory_space<vmem>>, vector<1x1x1x12x16xf32>
    %279 = vector.shape_cast %278 : vector<1x1x1x12x16xf32> to vector<12x16xf32>
    %280 = vector.shape_cast %277 : vector<12x16xf32> to vector<1x1x1x12x16xf32>
    tpu.vector_store %arg5[%c1_240, %c0_241, %c0_242, %c4_243, %c16_244], %280 {strides = array<i32>} : memref<3x1x1x16x64xf32, #tpu.memory_space<vmem>>, vector<1x1x1x12x16xf32>,
    %281 = arith.index_cast %154 : i32 to index
    %282 = memref.load %arg3[%281] : memref<8xi32, #tpu.memory_space<smem>>
    %c3_i32_245 = arith.constant 3 : i32
    %283 = arith.addi %c3_i32_245, %282 : i32
    %c0_246 = arith.constant 0 : index
    %284 = arith.index_cast %283 : i32 to index
    %c1_247 = arith.constant 1 : index
    %c1_248 = arith.constant 1 : index
    %285 = vector.load %arg4[%c0_246, %284, %c1_247, %c1_248] : memref<1x12x18x18xf32, #tpu.memory_space<vmem>>, vector<1x1x16x16xf32>
    %286 = vector.shape_cast %285 : vector<1x1x16x16xf32> to vector<16x16xf32>
    %c1_i32_249 = arith.constant 1 : i32
    %287 = arith.addi %154, %c1_i32_249 : i32
    %288 = arith.index_cast %287 : i32 to index
    %289 = memref.load %arg3[%288] : memref<8xi32, #tpu.memory_space<smem>>
    %c3_i32_250 = arith.constant 3 : i32
    %290 = arith.addi %c3_i32_250, %289 : i32
    %c0_251 = arith.constant 0 : index
    %291 = arith.index_cast %290 : i32 to index
    %c1_252 = arith.constant 1 : index
    %c1_253 = arith.constant 1 : index
    %292 = vector.load %arg4[%c0_251, %291, %c1_252, %c1_253] : memref<1x12x18x18xf32, #tpu.memory_space<vmem>>, vector<1x1x16x16xf32>
    %293 = vector.shape_cast %292 : vector<1x1x16x16xf32> to vector<16x16xf32>
    %294 = arith.addf %286, %293 : vector<16x16xf32>
    %c2_254 = arith.constant 2 : index
    %c0_255 = arith.constant 0 : index
    %c0_256 = arith.constant 0 : index
    %c0_257 = arith.constant 0 : index
    %c16_258 = arith.constant 16 : index
    %295 = vector.load %arg5[%c2_254, %c0_255, %c0_256, %c0_257, %c16_258] : memref<3x1x1x16x64xf32, #tpu.memory_space<vmem>>, vector<1x1x1x16x16xf32>
    %296 = vector.shape_cast %295 : vector<1x1x1x16x16xf32> to vector<16x16xf32>
    %297 = vector.shape_cast %294 : vector<16x16xf32> to vector<1x1x1x16x16xf32>
    tpu.vector_store %arg5[%c2_254, %c0_255, %c0_256, %c0_257, %c16_258], %297 {strides = array<i32>} : memref<3x1x1x16x64xf32, #tpu.memory_space<vmem>>, vector<1x1x1x16x16xf32>,
    %c4_i32_259 = arith.constant 4 : i32
    %298 = arith.muli %arg1, %c4_i32_259 : i32
    %c2_i32_260 = arith.constant 2 : i32
    %299 = arith.addi %298, %c2_i32_260 : i32
    %c2_i32_261 = arith.constant 2 : i32
    %300 = arith.muli %299, %c2_i32_261 : i32
    %c6_i32_262 = arith.constant 6 : i32
    %301 = arith.muli %300, %c6_i32_262 : i32
    %c6_i32_263 = arith.constant 6 : i32
    %302 = arith.addi %301, %c6_i32_263 : i32
    %c2_i32_264 = arith.constant 2 : i32
    %303 = arith.muli %299, %c2_i32_264 : i32
    %c0_i32_265 = arith.constant 0 : i32
    %304 = arith.addi %301, %c0_i32_265 : i32
    %305 = arith.index_cast %304 : i32 to index
    %306 = memref.load %arg2[%305] : memref<48xi32, #tpu.memory_space<smem>>
    %c6_i32_266 = arith.constant 6 : i32
    %307 = arith.addi %c6_i32_266, %306 : i32
    %c0_267 = arith.constant 0 : index
    %308 = arith.index_cast %307 : i32 to index
    %c1_268 = arith.constant 1 : index
    %c2_269 = arith.constant 2 : index
    %309 = vector.load %arg4[%c0_267, %308, %c1_268, %c2_269] : memref<1x12x18x18xf32, #tpu.memory_space<vmem>>, vector<1x1x16x16xf32>
    %310 = vector.shape_cast %309 : vector<1x1x16x16xf32> to vector<16x16xf32>
    %c3_i32_270 = arith.constant 3 : i32
    %311 = arith.addi %301, %c3_i32_270 : i32
    %c0_i32_271 = arith.constant 0 : i32
    %312 = arith.addi %311, %c0_i32_271 : i32
    %313 = arith.index_cast %312 : i32 to index
    %314 = memref.load %arg2[%313] : memref<48xi32, #tpu.memory_space<smem>>
    %c6_i32_272 = arith.constant 6 : i32
    %315 = arith.addi %c6_i32_272, %314 : i32
    %c0_273 = arith.constant 0 : index
    %316 = arith.index_cast %315 : i32 to index
    %c1_274 = arith.constant 1 : index
    %c2_275 = arith.constant 2 : index
    %317 = vector.load %arg4[%c0_273, %316, %c1_274, %c2_275] : memref<1x12x18x18xf32, #tpu.memory_space<vmem>>, vector<1x1x16x16xf32>
    %318 = vector.shape_cast %317 : vector<1x1x16x16xf32> to vector<16x16xf32>
    %319 = arith.addf %310, %318 : vector<16x16xf32>
    %c0_276 = arith.constant 0 : index
    %c0_277 = arith.constant 0 : index
    %c0_278 = arith.constant 0 : index
    %c0_279 = arith.constant 0 : index
    %c32 = arith.constant 32 : index
    %320 = vector.load %arg5[%c0_276, %c0_277, %c0_278, %c0_279, %c32] : memref<3x1x1x16x64xf32, #tpu.memory_space<vmem>>, vector<1x1x1x16x16xf32>
    %321 = vector.shape_cast %320 : vector<1x1x1x16x16xf32> to vector<16x16xf32>
    %322 = vector.shape_cast %319 : vector<16x16xf32> to vector<1x1x1x16x16xf32>
    tpu.vector_store %arg5[%c0_276, %c0_277, %c0_278, %c0_279, %c32], %322 {strides = array<i32>} : memref<3x1x1x16x64xf32, #tpu.memory_space<vmem>>, vector<1x1x1x16x16xf32>,
    %c1_i32_280 = arith.constant 1 : i32
    %323 = arith.addi %301, %c1_i32_280 : i32
    %324 = arith.index_cast %323 : i32 to index
    %325 = memref.load %arg2[%324] : memref<48xi32, #tpu.memory_space<smem>>
    %c6_i32_281 = arith.constant 6 : i32
    %326 = arith.addi %c6_i32_281, %325 : i32
    %c0_282 = arith.constant 0 : index
    %327 = arith.index_cast %326 : i32 to index
    %c1_283 = arith.constant 1 : index
    %c0_284 = arith.constant 0 : index
    %328 = vector.load %arg4[%c0_282, %327, %c1_283, %c0_284] : memref<1x12x18x18xf32, #tpu.memory_space<vmem>>, vector<1x1x16x15xf32>
    %329 = vector.shape_cast %328 : vector<1x1x16x15xf32> to vector<16x15xf32>
    %c3_i32_285 = arith.constant 3 : i32
    %330 = arith.addi %301, %c3_i32_285 : i32
    %c1_i32_286 = arith.constant 1 : i32
    %331 = arith.addi %330, %c1_i32_286 : i32
    %332 = arith.index_cast %331 : i32 to index
    %333 = memref.load %arg2[%332] : memref<48xi32, #tpu.memory_space<smem>>
    %c6_i32_287 = arith.constant 6 : i32
    %334 = arith.addi %c6_i32_287, %333 : i32
    %c0_288 = arith.constant 0 : index
    %335 = arith.index_cast %334 : i32 to index
    %c1_289 = arith.constant 1 : index
    %c0_290 = arith.constant 0 : index
    %336 = vector.load %arg4[%c0_288, %335, %c1_289, %c0_290] : memref<1x12x18x18xf32, #tpu.memory_space<vmem>>, vector<1x1x16x15xf32>
    %337 = vector.shape_cast %336 : vector<1x1x16x15xf32> to vector<16x15xf32>
    %338 = arith.addf %329, %337 : vector<16x15xf32>
    %c0_291 = arith.constant 0 : index
    %c0_292 = arith.constant 0 : index
    %c0_293 = arith.constant 0 : index
    %c0_294 = arith.constant 0 : index
    %c33 = arith.constant 33 : index
    %339 = vector.load %arg5[%c0_291, %c0_292, %c0_293, %c0_294, %c33] : memref<3x1x1x16x64xf32, #tpu.memory_space<vmem>>, vector<1x1x1x16x15xf32>
    %340 = vector.shape_cast %339 : vector<1x1x1x16x15xf32> to vector<16x15xf32>
    %341 = arith.addf %340, %338 : vector<16x15xf32>
    %c0_295 = arith.constant 0 : index
    %c0_296 = arith.constant 0 : index
    %c0_297 = arith.constant 0 : index
    %c0_298 = arith.constant 0 : index
    %c33_299 = arith.constant 33 : index
    %342 = vector.load %arg5[%c0_295, %c0_296, %c0_297, %c0_298, %c33_299] : memref<3x1x1x16x64xf32, #tpu.memory_space<vmem>>, vector<1x1x1x16x15xf32>
    %343 = vector.shape_cast %342 : vector<1x1x1x16x15xf32> to vector<16x15xf32>
    %344 = vector.shape_cast %341 : vector<16x15xf32> to vector<1x1x1x16x15xf32>
    tpu.vector_store %arg5[%c0_295, %c0_296, %c0_297, %c0_298, %c33_299], %344 {strides = array<i32>} : memref<3x1x1x16x64xf32, #tpu.memory_space<vmem>>, vector<1x1x1x16x15xf32>,
    %c2_i32_300 = arith.constant 2 : i32
    %345 = arith.addi %301, %c2_i32_300 : i32
    %346 = arith.index_cast %345 : i32 to index
    %347 = memref.load %arg2[%346] : memref<48xi32, #tpu.memory_space<smem>>
    %c6_i32_301 = arith.constant 6 : i32
    %348 = arith.addi %c6_i32_301, %347 : i32
    %c0_302 = arith.constant 0 : index
    %349 = arith.index_cast %348 : i32 to index
    %c1_303 = arith.constant 1 : index
    %c0_304 = arith.constant 0 : index
    %350 = vector.load %arg4[%c0_302, %349, %c1_303, %c0_304] : memref<1x12x18x18xf32, #tpu.memory_space<vmem>>, vector<1x1x16x12xf32>
    %351 = vector.shape_cast %350 : vector<1x1x16x12xf32> to vector<16x12xf32>
    %c3_i32_305 = arith.constant 3 : i32
    %352 = arith.addi %301, %c3_i32_305 : i32
    %c2_i32_306 = arith.constant 2 : i32
    %353 = arith.addi %352, %c2_i32_306 : i32
    %354 = arith.index_cast %353 : i32 to index
    %355 = memref.load %arg2[%354] : memref<48xi32, #tpu.memory_space<smem>>
    %c6_i32_307 = arith.constant 6 : i32
    %356 = arith.addi %c6_i32_307, %355 : i32
    %c0_308 = arith.constant 0 : index
    %357 = arith.index_cast %356 : i32 to index
    %c1_309 = arith.constant 1 : index
    %c0_310 = arith.constant 0 : index
    %358 = vector.load %arg4[%c0_308, %357, %c1_309, %c0_310] : memref<1x12x18x18xf32, #tpu.memory_space<vmem>>, vector<1x1x16x12xf32>
    %359 = vector.shape_cast %358 : vector<1x1x16x12xf32> to vector<16x12xf32>
    %360 = arith.addf %351, %359 : vector<16x12xf32>
    %c0_311 = arith.constant 0 : index
    %c0_312 = arith.constant 0 : index
    %c0_313 = arith.constant 0 : index
    %c0_314 = arith.constant 0 : index
    %c36 = arith.constant 36 : index
    %361 = vector.load %arg5[%c0_311, %c0_312, %c0_313, %c0_314, %c36] : memref<3x1x1x16x64xf32, #tpu.memory_space<vmem>>, vector<1x1x1x16x12xf32>
    %362 = vector.shape_cast %361 : vector<1x1x1x16x12xf32> to vector<16x12xf32>
    %363 = arith.addf %362, %360 : vector<16x12xf32>
    %c0_315 = arith.constant 0 : index
    %c0_316 = arith.constant 0 : index
    %c0_317 = arith.constant 0 : index
    %c0_318 = arith.constant 0 : index
    %c36_319 = arith.constant 36 : index
    %364 = vector.load %arg5[%c0_315, %c0_316, %c0_317, %c0_318, %c36_319] : memref<3x1x1x16x64xf32, #tpu.memory_space<vmem>>, vector<1x1x1x16x12xf32>
    %365 = vector.shape_cast %364 : vector<1x1x1x16x12xf32> to vector<16x12xf32>
    %366 = vector.shape_cast %363 : vector<16x12xf32> to vector<1x1x1x16x12xf32>
    tpu.vector_store %arg5[%c0_315, %c0_316, %c0_317, %c0_318, %c36_319], %366 {strides = array<i32>} : memref<3x1x1x16x64xf32, #tpu.memory_space<vmem>>, vector<1x1x1x16x12xf32>,
    %c0_i32_320 = arith.constant 0 : i32
    %367 = arith.addi %302, %c0_i32_320 : i32
    %368 = arith.index_cast %367 : i32 to index
    %369 = memref.load %arg2[%368] : memref<48xi32, #tpu.memory_space<smem>>
    %c6_i32_321 = arith.constant 6 : i32
    %370 = arith.addi %c6_i32_321, %369 : i32
    %c0_322 = arith.constant 0 : index
    %371 = arith.index_cast %370 : i32 to index
    %c2_323 = arith.constant 2 : index
    %c1_324 = arith.constant 1 : index
    %372 = vector.load %arg4[%c0_322, %371, %c2_323, %c1_324] : memref<1x12x18x18xf32, #tpu.memory_space<vmem>>, vector<1x1x16x16xf32>
    %373 = vector.shape_cast %372 : vector<1x1x16x16xf32> to vector<16x16xf32>
    %c3_i32_325 = arith.constant 3 : i32
    %374 = arith.addi %302, %c3_i32_325 : i32
    %c0_i32_326 = arith.constant 0 : i32
    %375 = arith.addi %374, %c0_i32_326 : i32
    %376 = arith.index_cast %375 : i32 to index
    %377 = memref.load %arg2[%376] : memref<48xi32, #tpu.memory_space<smem>>
    %c6_i32_327 = arith.constant 6 : i32
    %378 = arith.addi %c6_i32_327, %377 : i32
    %c0_328 = arith.constant 0 : index
    %379 = arith.index_cast %378 : i32 to index
    %c2_329 = arith.constant 2 : index
    %c1_330 = arith.constant 1 : index
    %380 = vector.load %arg4[%c0_328, %379, %c2_329, %c1_330] : memref<1x12x18x18xf32, #tpu.memory_space<vmem>>, vector<1x1x16x16xf32>
    %381 = vector.shape_cast %380 : vector<1x1x16x16xf32> to vector<16x16xf32>
    %382 = arith.addf %373, %381 : vector<16x16xf32>
    %c1_331 = arith.constant 1 : index
    %c0_332 = arith.constant 0 : index
    %c0_333 = arith.constant 0 : index
    %c0_334 = arith.constant 0 : index
    %c32_335 = arith.constant 32 : index
    %383 = vector.load %arg5[%c1_331, %c0_332, %c0_333, %c0_334, %c32_335] : memref<3x1x1x16x64xf32, #tpu.memory_space<vmem>>, vector<1x1x1x16x16xf32>
    %384 = vector.shape_cast %383 : vector<1x1x1x16x16xf32> to vector<16x16xf32>
    %385 = vector.shape_cast %382 : vector<16x16xf32> to vector<1x1x1x16x16xf32>
    tpu.vector_store %arg5[%c1_331, %c0_332, %c0_333, %c0_334, %c32_335], %385 {strides = array<i32>} : memref<3x1x1x16x64xf32, #tpu.memory_space<vmem>>, vector<1x1x1x16x16xf32>,
    %c1_i32_336 = arith.constant 1 : i32
    %386 = arith.addi %302, %c1_i32_336 : i32
    %387 = arith.index_cast %386 : i32 to index
    %388 = memref.load %arg2[%387] : memref<48xi32, #tpu.memory_space<smem>>
    %c6_i32_337 = arith.constant 6 : i32
    %389 = arith.addi %c6_i32_337, %388 : i32
    %c0_338 = arith.constant 0 : index
    %390 = arith.index_cast %389 : i32 to index
    %c0_339 = arith.constant 0 : index
    %c1_340 = arith.constant 1 : index
    %391 = vector.load %arg4[%c0_338, %390, %c0_339, %c1_340] : memref<1x12x18x18xf32, #tpu.memory_space<vmem>>, vector<1x1x15x16xf32>
    %392 = vector.shape_cast %391 : vector<1x1x15x16xf32> to vector<15x16xf32>
    %c3_i32_341 = arith.constant 3 : i32
    %393 = arith.addi %302, %c3_i32_341 : i32
    %c1_i32_342 = arith.constant 1 : i32
    %394 = arith.addi %393, %c1_i32_342 : i32
    %395 = arith.index_cast %394 : i32 to index
    %396 = memref.load %arg2[%395] : memref<48xi32, #tpu.memory_space<smem>>
    %c6_i32_343 = arith.constant 6 : i32
    %397 = arith.addi %c6_i32_343, %396 : i32
    %c0_344 = arith.constant 0 : index
    %398 = arith.index_cast %397 : i32 to index
    %c0_345 = arith.constant 0 : index
    %c1_346 = arith.constant 1 : index
    %399 = vector.load %arg4[%c0_344, %398, %c0_345, %c1_346] : memref<1x12x18x18xf32, #tpu.memory_space<vmem>>, vector<1x1x15x16xf32>
    %400 = vector.shape_cast %399 : vector<1x1x15x16xf32> to vector<15x16xf32>
    %401 = arith.addf %392, %400 : vector<15x16xf32>
    %c1_347 = arith.constant 1 : index
    %c0_348 = arith.constant 0 : index
    %c0_349 = arith.constant 0 : index
    %c1_350 = arith.constant 1 : index
    %c32_351 = arith.constant 32 : index
    %402 = vector.load %arg5[%c1_347, %c0_348, %c0_349, %c1_350, %c32_351] : memref<3x1x1x16x64xf32, #tpu.memory_space<vmem>>, vector<1x1x1x15x16xf32>
    %403 = vector.shape_cast %402 : vector<1x1x1x15x16xf32> to vector<15x16xf32>
    %404 = arith.addf %403, %401 : vector<15x16xf32>
    %c1_352 = arith.constant 1 : index
    %c0_353 = arith.constant 0 : index
    %c0_354 = arith.constant 0 : index
    %c1_355 = arith.constant 1 : index
    %c32_356 = arith.constant 32 : index
    %405 = vector.load %arg5[%c1_352, %c0_353, %c0_354, %c1_355, %c32_356] : memref<3x1x1x16x64xf32, #tpu.memory_space<vmem>>, vector<1x1x1x15x16xf32>
    %406 = vector.shape_cast %405 : vector<1x1x1x15x16xf32> to vector<15x16xf32>
    %407 = vector.shape_cast %404 : vector<15x16xf32> to vector<1x1x1x15x16xf32>
    tpu.vector_store %arg5[%c1_352, %c0_353, %c0_354, %c1_355, %c32_356], %407 {strides = array<i32>} : memref<3x1x1x16x64xf32, #tpu.memory_space<vmem>>, vector<1x1x1x15x16xf32>,
    %c2_i32_357 = arith.constant 2 : i32
    %408 = arith.addi %302, %c2_i32_357 : i32
    %409 = arith.index_cast %408 : i32 to index
    %410 = memref.load %arg2[%409] : memref<48xi32, #tpu.memory_space<smem>>
    %c6_i32_358 = arith.constant 6 : i32
    %411 = arith.addi %c6_i32_358, %410 : i32
    %c0_359 = arith.constant 0 : index
    %412 = arith.index_cast %411 : i32 to index
    %c0_360 = arith.constant 0 : index
    %c1_361 = arith.constant 1 : index
    %413 = vector.load %arg4[%c0_359, %412, %c0_360, %c1_361] : memref<1x12x18x18xf32, #tpu.memory_space<vmem>>, vector<1x1x12x16xf32>
    %414 = vector.shape_cast %413 : vector<1x1x12x16xf32> to vector<12x16xf32>
    %c3_i32_362 = arith.constant 3 : i32
    %415 = arith.addi %302, %c3_i32_362 : i32
    %c2_i32_363 = arith.constant 2 : i32
    %416 = arith.addi %415, %c2_i32_363 : i32
    %417 = arith.index_cast %416 : i32 to index
    %418 = memref.load %arg2[%417] : memref<48xi32, #tpu.memory_space<smem>>
    %c6_i32_364 = arith.constant 6 : i32
    %419 = arith.addi %c6_i32_364, %418 : i32
    %c0_365 = arith.constant 0 : index
    %420 = arith.index_cast %419 : i32 to index
    %c0_366 = arith.constant 0 : index
    %c1_367 = arith.constant 1 : index
    %421 = vector.load %arg4[%c0_365, %420, %c0_366, %c1_367] : memref<1x12x18x18xf32, #tpu.memory_space<vmem>>, vector<1x1x12x16xf32>
    %422 = vector.shape_cast %421 : vector<1x1x12x16xf32> to vector<12x16xf32>
    %423 = arith.addf %414, %422 : vector<12x16xf32>
    %c1_368 = arith.constant 1 : index
    %c0_369 = arith.constant 0 : index
    %c0_370 = arith.constant 0 : index
    %c4_371 = arith.constant 4 : index
    %c32_372 = arith.constant 32 : index
    %424 = vector.load %arg5[%c1_368, %c0_369, %c0_370, %c4_371, %c32_372] : memref<3x1x1x16x64xf32, #tpu.memory_space<vmem>>, vector<1x1x1x12x16xf32>
    %425 = vector.shape_cast %424 : vector<1x1x1x12x16xf32> to vector<12x16xf32>
    %426 = arith.addf %425, %423 : vector<12x16xf32>
    %c1_373 = arith.constant 1 : index
    %c0_374 = arith.constant 0 : index
    %c0_375 = arith.constant 0 : index
    %c4_376 = arith.constant 4 : index
    %c32_377 = arith.constant 32 : index
    %427 = vector.load %arg5[%c1_373, %c0_374, %c0_375, %c4_376, %c32_377] : memref<3x1x1x16x64xf32, #tpu.memory_space<vmem>>, vector<1x1x1x12x16xf32>
    %428 = vector.shape_cast %427 : vector<1x1x1x12x16xf32> to vector<12x16xf32>
    %429 = vector.shape_cast %426 : vector<12x16xf32> to vector<1x1x1x12x16xf32>
    tpu.vector_store %arg5[%c1_373, %c0_374, %c0_375, %c4_376, %c32_377], %429 {strides = array<i32>} : memref<3x1x1x16x64xf32, #tpu.memory_space<vmem>>, vector<1x1x1x12x16xf32>,
    %430 = arith.index_cast %303 : i32 to index
    %431 = memref.load %arg3[%430] : memref<8xi32, #tpu.memory_space<smem>>
    %c6_i32_378 = arith.constant 6 : i32
    %432 = arith.addi %c6_i32_378, %431 : i32
    %c0_379 = arith.constant 0 : index
    %433 = arith.index_cast %432 : i32 to index
    %c1_380 = arith.constant 1 : index
    %c1_381 = arith.constant 1 : index
    %434 = vector.load %arg4[%c0_379, %433, %c1_380, %c1_381] : memref<1x12x18x18xf32, #tpu.memory_space<vmem>>, vector<1x1x16x16xf32>
    %435 = vector.shape_cast %434 : vector<1x1x16x16xf32> to vector<16x16xf32>
    %c1_i32_382 = arith.constant 1 : i32
    %436 = arith.addi %303, %c1_i32_382 : i32
    %437 = arith.index_cast %436 : i32 to index
    %438 = memref.load %arg3[%437] : memref<8xi32, #tpu.memory_space<smem>>
    %c6_i32_383 = arith.constant 6 : i32
    %439 = arith.addi %c6_i32_383, %438 : i32
    %c0_384 = arith.constant 0 : index
    %440 = arith.index_cast %439 : i32 to index
    %c1_385 = arith.constant 1 : index
    %c1_386 = arith.constant 1 : index
    %441 = vector.load %arg4[%c0_384, %440, %c1_385, %c1_386] : memref<1x12x18x18xf32, #tpu.memory_space<vmem>>, vector<1x1x16x16xf32>
    %442 = vector.shape_cast %441 : vector<1x1x16x16xf32> to vector<16x16xf32>
    %443 = arith.addf %435, %442 : vector<16x16xf32>
    %c2_387 = arith.constant 2 : index
    %c0_388 = arith.constant 0 : index
    %c0_389 = arith.constant 0 : index
    %c0_390 = arith.constant 0 : index
    %c32_391 = arith.constant 32 : index
    %444 = vector.load %arg5[%c2_387, %c0_388, %c0_389, %c0_390, %c32_391] : memref<3x1x1x16x64xf32, #tpu.memory_space<vmem>>, vector<1x1x1x16x16xf32>
    %445 = vector.shape_cast %444 : vector<1x1x1x16x16xf32> to vector<16x16xf32>
    %446 = vector.shape_cast %443 : vector<16x16xf32> to vector<1x1x1x16x16xf32>
    tpu.vector_store %arg5[%c2_387, %c0_388, %c0_389, %c0_390, %c32_391], %446 {strides = array<i32>} : memref<3x1x1x16x64xf32, #tpu.memory_space<vmem>>, vector<1x1x1x16x16xf32>,
    %c4_i32_392 = arith.constant 4 : i32
    %447 = arith.muli %arg1, %c4_i32_392 : i32
    %c3_i32_393 = arith.constant 3 : i32
    %448 = arith.addi %447, %c3_i32_393 : i32
    %c2_i32_394 = arith.constant 2 : i32
    %449 = arith.muli %448, %c2_i32_394 : i32
    %c6_i32_395 = arith.constant 6 : i32
    %450 = arith.muli %449, %c6_i32_395 : i32
    %c6_i32_396 = arith.constant 6 : i32
    %451 = arith.addi %450, %c6_i32_396 : i32
    %c2_i32_397 = arith.constant 2 : i32
    %452 = arith.muli %448, %c2_i32_397 : i32
    %c0_i32_398 = arith.constant 0 : i32
    %453 = arith.addi %450, %c0_i32_398 : i32
    %454 = arith.index_cast %453 : i32 to index
    %455 = memref.load %arg2[%454] : memref<48xi32, #tpu.memory_space<smem>>
    %c9_i32 = arith.constant 9 : i32
    %456 = arith.addi %c9_i32, %455 : i32
    %c0_399 = arith.constant 0 : index
    %457 = arith.index_cast %456 : i32 to index
    %c1_400 = arith.constant 1 : index
    %c2_401 = arith.constant 2 : index
    %458 = vector.load %arg4[%c0_399, %457, %c1_400, %c2_401] : memref<1x12x18x18xf32, #tpu.memory_space<vmem>>, vector<1x1x16x16xf32>
    %459 = vector.shape_cast %458 : vector<1x1x16x16xf32> to vector<16x16xf32>
    %c3_i32_402 = arith.constant 3 : i32
    %460 = arith.addi %450, %c3_i32_402 : i32
    %c0_i32_403 = arith.constant 0 : i32
    %461 = arith.addi %460, %c0_i32_403 : i32
    %462 = arith.index_cast %461 : i32 to index
    %463 = memref.load %arg2[%462] : memref<48xi32, #tpu.memory_space<smem>>
    %c9_i32_404 = arith.constant 9 : i32
    %464 = arith.addi %c9_i32_404, %463 : i32
    %c0_405 = arith.constant 0 : index
    %465 = arith.index_cast %464 : i32 to index
    %c1_406 = arith.constant 1 : index
    %c2_407 = arith.constant 2 : index
    %466 = vector.load %arg4[%c0_405, %465, %c1_406, %c2_407] : memref<1x12x18x18xf32, #tpu.memory_space<vmem>>, vector<1x1x16x16xf32>
    %467 = vector.shape_cast %466 : vector<1x1x16x16xf32> to vector<16x16xf32>
    %468 = arith.addf %459, %467 : vector<16x16xf32>
    %c0_408 = arith.constant 0 : index
    %c0_409 = arith.constant 0 : index
    %c0_410 = arith.constant 0 : index
    %c0_411 = arith.constant 0 : index
    %c48 = arith.constant 48 : index
    %469 = vector.load %arg5[%c0_408, %c0_409, %c0_410, %c0_411, %c48] : memref<3x1x1x16x64xf32, #tpu.memory_space<vmem>>, vector<1x1x1x16x16xf32>
    %470 = vector.shape_cast %469 : vector<1x1x1x16x16xf32> to vector<16x16xf32>
    %471 = vector.shape_cast %468 : vector<16x16xf32> to vector<1x1x1x16x16xf32>
    tpu.vector_store %arg5[%c0_408, %c0_409, %c0_410, %c0_411, %c48], %471 {strides = array<i32>} : memref<3x1x1x16x64xf32, #tpu.memory_space<vmem>>, vector<1x1x1x16x16xf32>,
    %c1_i32_412 = arith.constant 1 : i32
    %472 = arith.addi %450, %c1_i32_412 : i32
    %473 = arith.index_cast %472 : i32 to index
    %474 = memref.load %arg2[%473] : memref<48xi32, #tpu.memory_space<smem>>
    %c9_i32_413 = arith.constant 9 : i32
    %475 = arith.addi %c9_i32_413, %474 : i32
    %c0_414 = arith.constant 0 : index
    %476 = arith.index_cast %475 : i32 to index
    %c1_415 = arith.constant 1 : index
    %c0_416 = arith.constant 0 : index
    %477 = vector.load %arg4[%c0_414, %476, %c1_415, %c0_416] : memref<1x12x18x18xf32, #tpu.memory_space<vmem>>, vector<1x1x16x15xf32>
    %478 = vector.shape_cast %477 : vector<1x1x16x15xf32> to vector<16x15xf32>
    %c3_i32_417 = arith.constant 3 : i32
    %479 = arith.addi %450, %c3_i32_417 : i32
    %c1_i32_418 = arith.constant 1 : i32
    %480 = arith.addi %479, %c1_i32_418 : i32
    %481 = arith.index_cast %480 : i32 to index
    %482 = memref.load %arg2[%481] : memref<48xi32, #tpu.memory_space<smem>>
    %c9_i32_419 = arith.constant 9 : i32
    %483 = arith.addi %c9_i32_419, %482 : i32
    %c0_420 = arith.constant 0 : index
    %484 = arith.index_cast %483 : i32 to index
    %c1_421 = arith.constant 1 : index
    %c0_422 = arith.constant 0 : index
    %485 = vector.load %arg4[%c0_420, %484, %c1_421, %c0_422] : memref<1x12x18x18xf32, #tpu.memory_space<vmem>>, vector<1x1x16x15xf32>
    %486 = vector.shape_cast %485 : vector<1x1x16x15xf32> to vector<16x15xf32>
    %487 = arith.addf %478, %486 : vector<16x15xf32>
    %c0_423 = arith.constant 0 : index
    %c0_424 = arith.constant 0 : index
    %c0_425 = arith.constant 0 : index
    %c0_426 = arith.constant 0 : index
    %c49 = arith.constant 49 : index
    %488 = vector.load %arg5[%c0_423, %c0_424, %c0_425, %c0_426, %c49] : memref<3x1x1x16x64xf32, #tpu.memory_space<vmem>>, vector<1x1x1x16x15xf32>
    %489 = vector.shape_cast %488 : vector<1x1x1x16x15xf32> to vector<16x15xf32>
    %490 = arith.addf %489, %487 : vector<16x15xf32>
    %c0_427 = arith.constant 0 : index
    %c0_428 = arith.constant 0 : index
    %c0_429 = arith.constant 0 : index
    %c0_430 = arith.constant 0 : index
    %c49_431 = arith.constant 49 : index
    %491 = vector.load %arg5[%c0_427, %c0_428, %c0_429, %c0_430, %c49_431] : memref<3x1x1x16x64xf32, #tpu.memory_space<vmem>>, vector<1x1x1x16x15xf32>
    %492 = vector.shape_cast %491 : vector<1x1x1x16x15xf32> to vector<16x15xf32>
    %493 = vector.shape_cast %490 : vector<16x15xf32> to vector<1x1x1x16x15xf32>
    tpu.vector_store %arg5[%c0_427, %c0_428, %c0_429, %c0_430, %c49_431], %493 {strides = array<i32>} : memref<3x1x1x16x64xf32, #tpu.memory_space<vmem>>, vector<1x1x1x16x15xf32>,
    %c2_i32_432 = arith.constant 2 : i32
    %494 = arith.addi %450, %c2_i32_432 : i32
    %495 = arith.index_cast %494 : i32 to index
    %496 = memref.load %arg2[%495] : memref<48xi32, #tpu.memory_space<smem>>
    %c9_i32_433 = arith.constant 9 : i32
    %497 = arith.addi %c9_i32_433, %496 : i32
    %c0_434 = arith.constant 0 : index
    %498 = arith.index_cast %497 : i32 to index
    %c1_435 = arith.constant 1 : index
    %c0_436 = arith.constant 0 : index
    %499 = vector.load %arg4[%c0_434, %498, %c1_435, %c0_436] : memref<1x12x18x18xf32, #tpu.memory_space<vmem>>, vector<1x1x16x12xf32>
    %500 = vector.shape_cast %499 : vector<1x1x16x12xf32> to vector<16x12xf32>
    %c3_i32_437 = arith.constant 3 : i32
    %501 = arith.addi %450, %c3_i32_437 : i32
    %c2_i32_438 = arith.constant 2 : i32
    %502 = arith.addi %501, %c2_i32_438 : i32
    %503 = arith.index_cast %502 : i32 to index
    %504 = memref.load %arg2[%503] : memref<48xi32, #tpu.memory_space<smem>>
    %c9_i32_439 = arith.constant 9 : i32
    %505 = arith.addi %c9_i32_439, %504 : i32
    %c0_440 = arith.constant 0 : index
    %506 = arith.index_cast %505 : i32 to index
    %c1_441 = arith.constant 1 : index
    %c0_442 = arith.constant 0 : index
    %507 = vector.load %arg4[%c0_440, %506, %c1_441, %c0_442] : memref<1x12x18x18xf32, #tpu.memory_space<vmem>>, vector<1x1x16x12xf32>
    %508 = vector.shape_cast %507 : vector<1x1x16x12xf32> to vector<16x12xf32>
    %509 = arith.addf %500, %508 : vector<16x12xf32>
    %c0_443 = arith.constant 0 : index
    %c0_444 = arith.constant 0 : index
    %c0_445 = arith.constant 0 : index
    %c0_446 = arith.constant 0 : index
    %c52 = arith.constant 52 : index
    %510 = vector.load %arg5[%c0_443, %c0_444, %c0_445, %c0_446, %c52] : memref<3x1x1x16x64xf32, #tpu.memory_space<vmem>>, vector<1x1x1x16x12xf32>
    %511 = vector.shape_cast %510 : vector<1x1x1x16x12xf32> to vector<16x12xf32>
    %512 = arith.addf %511, %509 : vector<16x12xf32>
    %c0_447 = arith.constant 0 : index
    %c0_448 = arith.constant 0 : index
    %c0_449 = arith.constant 0 : index
    %c0_450 = arith.constant 0 : index
    %c52_451 = arith.constant 52 : index
    %513 = vector.load %arg5[%c0_447, %c0_448, %c0_449, %c0_450, %c52_451] : memref<3x1x1x16x64xf32, #tpu.memory_space<vmem>>, vector<1x1x1x16x12xf32>
    %514 = vector.shape_cast %513 : vector<1x1x1x16x12xf32> to vector<16x12xf32>
    %515 = vector.shape_cast %512 : vector<16x12xf32> to vector<1x1x1x16x12xf32>
    tpu.vector_store %arg5[%c0_447, %c0_448, %c0_449, %c0_450, %c52_451], %515 {strides = array<i32>} : memref<3x1x1x16x64xf32, #tpu.memory_space<vmem>>, vector<1x1x1x16x12xf32>,
    %c0_i32_452 = arith.constant 0 : i32
    %516 = arith.addi %451, %c0_i32_452 : i32
    %517 = arith.index_cast %516 : i32 to index
    %518 = memref.load %arg2[%517] : memref<48xi32, #tpu.memory_space<smem>>
    %c9_i32_453 = arith.constant 9 : i32
    %519 = arith.addi %c9_i32_453, %518 : i32
    %c0_454 = arith.constant 0 : index
    %520 = arith.index_cast %519 : i32 to index
    %c2_455 = arith.constant 2 : index
    %c1_456 = arith.constant 1 : index
    %521 = vector.load %arg4[%c0_454, %520, %c2_455, %c1_456] : memref<1x12x18x18xf32, #tpu.memory_space<vmem>>, vector<1x1x16x16xf32>
    %522 = vector.shape_cast %521 : vector<1x1x16x16xf32> to vector<16x16xf32>
    %c3_i32_457 = arith.constant 3 : i32
    %523 = arith.addi %451, %c3_i32_457 : i32
    %c0_i32_458 = arith.constant 0 : i32
    %524 = arith.addi %523, %c0_i32_458 : i32
    %525 = arith.index_cast %524 : i32 to index
    %526 = memref.load %arg2[%525] : memref<48xi32, #tpu.memory_space<smem>>
    %c9_i32_459 = arith.constant 9 : i32
    %527 = arith.addi %c9_i32_459, %526 : i32
    %c0_460 = arith.constant 0 : index
    %528 = arith.index_cast %527 : i32 to index
    %c2_461 = arith.constant 2 : index
    %c1_462 = arith.constant 1 : index
    %529 = vector.load %arg4[%c0_460, %528, %c2_461, %c1_462] : memref<1x12x18x18xf32, #tpu.memory_space<vmem>>, vector<1x1x16x16xf32>
    %530 = vector.shape_cast %529 : vector<1x1x16x16xf32> to vector<16x16xf32>
    %531 = arith.addf %522, %530 : vector<16x16xf32>
    %c1_463 = arith.constant 1 : index
    %c0_464 = arith.constant 0 : index
    %c0_465 = arith.constant 0 : index
    %c0_466 = arith.constant 0 : index
    %c48_467 = arith.constant 48 : index
    %532 = vector.load %arg5[%c1_463, %c0_464, %c0_465, %c0_466, %c48_467] : memref<3x1x1x16x64xf32, #tpu.memory_space<vmem>>, vector<1x1x1x16x16xf32>
    %533 = vector.shape_cast %532 : vector<1x1x1x16x16xf32> to vector<16x16xf32>
    %534 = vector.shape_cast %531 : vector<16x16xf32> to vector<1x1x1x16x16xf32>
    tpu.vector_store %arg5[%c1_463, %c0_464, %c0_465, %c0_466, %c48_467], %534 {strides = array<i32>} : memref<3x1x1x16x64xf32, #tpu.memory_space<vmem>>, vector<1x1x1x16x16xf32>,
    %c1_i32_468 = arith.constant 1 : i32
    %535 = arith.addi %451, %c1_i32_468 : i32
    %536 = arith.index_cast %535 : i32 to index
    %537 = memref.load %arg2[%536] : memref<48xi32, #tpu.memory_space<smem>>
    %c9_i32_469 = arith.constant 9 : i32
    %538 = arith.addi %c9_i32_469, %537 : i32
    %c0_470 = arith.constant 0 : index
    %539 = arith.index_cast %538 : i32 to index
    %c0_471 = arith.constant 0 : index
    %c1_472 = arith.constant 1 : index
    %540 = vector.load %arg4[%c0_470, %539, %c0_471, %c1_472] : memref<1x12x18x18xf32, #tpu.memory_space<vmem>>, vector<1x1x15x16xf32>
    %541 = vector.shape_cast %540 : vector<1x1x15x16xf32> to vector<15x16xf32>
    %c3_i32_473 = arith.constant 3 : i32
    %542 = arith.addi %451, %c3_i32_473 : i32
    %c1_i32_474 = arith.constant 1 : i32
    %543 = arith.addi %542, %c1_i32_474 : i32
    %544 = arith.index_cast %543 : i32 to index
    %545 = memref.load %arg2[%544] : memref<48xi32, #tpu.memory_space<smem>>
    %c9_i32_475 = arith.constant 9 : i32
    %546 = arith.addi %c9_i32_475, %545 : i32
    %c0_476 = arith.constant 0 : index
    %547 = arith.index_cast %546 : i32 to index
    %c0_477 = arith.constant 0 : index
    %c1_478 = arith.constant 1 : index
    %548 = vector.load %arg4[%c0_476, %547, %c0_477, %c1_478] : memref<1x12x18x18xf32, #tpu.memory_space<vmem>>, vector<1x1x15x16xf32>
    %549 = vector.shape_cast %548 : vector<1x1x15x16xf32> to vector<15x16xf32>
    %550 = arith.addf %541, %549 : vector<15x16xf32>
    %c1_479 = arith.constant 1 : index
    %c0_480 = arith.constant 0 : index
    %c0_481 = arith.constant 0 : index
    %c1_482 = arith.constant 1 : index
    %c48_483 = arith.constant 48 : index
    %551 = vector.load %arg5[%c1_479, %c0_480, %c0_481, %c1_482, %c48_483] : memref<3x1x1x16x64xf32, #tpu.memory_space<vmem>>, vector<1x1x1x15x16xf32>
    %552 = vector.shape_cast %551 : vector<1x1x1x15x16xf32> to vector<15x16xf32>
    %553 = arith.addf %552, %550 : vector<15x16xf32>
    %c1_484 = arith.constant 1 : index
    %c0_485 = arith.constant 0 : index
    %c0_486 = arith.constant 0 : index
    %c1_487 = arith.constant 1 : index
    %c48_488 = arith.constant 48 : index
    %554 = vector.load %arg5[%c1_484, %c0_485, %c0_486, %c1_487, %c48_488] : memref<3x1x1x16x64xf32, #tpu.memory_space<vmem>>, vector<1x1x1x15x16xf32>
    %555 = vector.shape_cast %554 : vector<1x1x1x15x16xf32> to vector<15x16xf32>
    %556 = vector.shape_cast %553 : vector<15x16xf32> to vector<1x1x1x15x16xf32>
    tpu.vector_store %arg5[%c1_484, %c0_485, %c0_486, %c1_487, %c48_488], %556 {strides = array<i32>} : memref<3x1x1x16x64xf32, #tpu.memory_space<vmem>>, vector<1x1x1x15x16xf32>,
    %c2_i32_489 = arith.constant 2 : i32
    %557 = arith.addi %451, %c2_i32_489 : i32
    %558 = arith.index_cast %557 : i32 to index
    %559 = memref.load %arg2[%558] : memref<48xi32, #tpu.memory_space<smem>>
    %c9_i32_490 = arith.constant 9 : i32
    %560 = arith.addi %c9_i32_490, %559 : i32
    %c0_491 = arith.constant 0 : index
    %561 = arith.index_cast %560 : i32 to index
    %c0_492 = arith.constant 0 : index
    %c1_493 = arith.constant 1 : index
    %562 = vector.load %arg4[%c0_491, %561, %c0_492, %c1_493] : memref<1x12x18x18xf32, #tpu.memory_space<vmem>>, vector<1x1x12x16xf32>
    %563 = vector.shape_cast %562 : vector<1x1x12x16xf32> to vector<12x16xf32>
    %c3_i32_494 = arith.constant 3 : i32
    %564 = arith.addi %451, %c3_i32_494 : i32
    %c2_i32_495 = arith.constant 2 : i32
    %565 = arith.addi %564, %c2_i32_495 : i32
    %566 = arith.index_cast %565 : i32 to index
    %567 = memref.load %arg2[%566] : memref<48xi32, #tpu.memory_space<smem>>
    %c9_i32_496 = arith.constant 9 : i32
    %568 = arith.addi %c9_i32_496, %567 : i32
    %c0_497 = arith.constant 0 : index
    %569 = arith.index_cast %568 : i32 to index
    %c0_498 = arith.constant 0 : index
    %c1_499 = arith.constant 1 : index
    %570 = vector.load %arg4[%c0_497, %569, %c0_498, %c1_499] : memref<1x12x18x18xf32, #tpu.memory_space<vmem>>, vector<1x1x12x16xf32>
    %571 = vector.shape_cast %570 : vector<1x1x12x16xf32> to vector<12x16xf32>
    %572 = arith.addf %563, %571 : vector<12x16xf32>
    %c1_500 = arith.constant 1 : index
    %c0_501 = arith.constant 0 : index
    %c0_502 = arith.constant 0 : index
    %c4_503 = arith.constant 4 : index
    %c48_504 = arith.constant 48 : index
    %573 = vector.load %arg5[%c1_500, %c0_501, %c0_502, %c4_503, %c48_504] : memref<3x1x1x16x64xf32, #tpu.memory_space<vmem>>, vector<1x1x1x12x16xf32>
    %574 = vector.shape_cast %573 : vector<1x1x1x12x16xf32> to vector<12x16xf32>
    %575 = arith.addf %574, %572 : vector<12x16xf32>
    %c1_505 = arith.constant 1 : index
    %c0_506 = arith.constant 0 : index
    %c0_507 = arith.constant 0 : index
    %c4_508 = arith.constant 4 : index
    %c48_509 = arith.constant 48 : index
    %576 = vector.load %arg5[%c1_505, %c0_506, %c0_507, %c4_508, %c48_509] : memref<3x1x1x16x64xf32, #tpu.memory_space<vmem>>, vector<1x1x1x12x16xf32>
    %577 = vector.shape_cast %576 : vector<1x1x1x12x16xf32> to vector<12x16xf32>
    %578 = vector.shape_cast %575 : vector<12x16xf32> to vector<1x1x1x12x16xf32>
    tpu.vector_store %arg5[%c1_505, %c0_506, %c0_507, %c4_508, %c48_509], %578 {strides = array<i32>} : memref<3x1x1x16x64xf32, #tpu.memory_space<vmem>>, vector<1x1x1x12x16xf32>,
    %579 = arith.index_cast %452 : i32 to index
    %580 = memref.load %arg3[%579] : memref<8xi32, #tpu.memory_space<smem>>
    %c9_i32_510 = arith.constant 9 : i32
    %581 = arith.addi %c9_i32_510, %580 : i32
    %c0_511 = arith.constant 0 : index
    %582 = arith.index_cast %581 : i32 to index
    %c1_512 = arith.constant 1 : index
    %c1_513 = arith.constant 1 : index
    %583 = vector.load %arg4[%c0_511, %582, %c1_512, %c1_513] : memref<1x12x18x18xf32, #tpu.memory_space<vmem>>, vector<1x1x16x16xf32>
    %584 = vector.shape_cast %583 : vector<1x1x16x16xf32> to vector<16x16xf32>
    %c1_i32_514 = arith.constant 1 : i32
    %585 = arith.addi %452, %c1_i32_514 : i32
    %586 = arith.index_cast %585 : i32 to index
    %587 = memref.load %arg3[%586] : memref<8xi32, #tpu.memory_space<smem>>
    %c9_i32_515 = arith.constant 9 : i32
    %588 = arith.addi %c9_i32_515, %587 : i32
    %c0_516 = arith.constant 0 : index
    %589 = arith.index_cast %588 : i32 to index
    %c1_517 = arith.constant 1 : index
    %c1_518 = arith.constant 1 : index
    %590 = vector.load %arg4[%c0_516, %589, %c1_517, %c1_518] : memref<1x12x18x18xf32, #tpu.memory_space<vmem>>, vector<1x1x16x16xf32>
    %591 = vector.shape_cast %590 : vector<1x1x16x16xf32> to vector<16x16xf32>
    %592 = arith.addf %584, %591 : vector<16x16xf32>
    %c2_519 = arith.constant 2 : index
    %c0_520 = arith.constant 0 : index
    %c0_521 = arith.constant 0 : index
    %c0_522 = arith.constant 0 : index
    %c48_523 = arith.constant 48 : index
    %593 = vector.load %arg5[%c2_519, %c0_520, %c0_521, %c0_522, %c48_523] : memref<3x1x1x16x64xf32, #tpu.memory_space<vmem>>, vector<1x1x1x16x16xf32>
    %594 = vector.shape_cast %593 : vector<1x1x1x16x16xf32> to vector<16x16xf32>
    %595 = vector.shape_cast %592 : vector<16x16xf32> to vector<1x1x1x16x16xf32>
    tpu.vector_store %arg5[%c2_519, %c0_520, %c0_521, %c0_522, %c48_523], %595 {strides = array<i32>} : memref<3x1x1x16x64xf32, #tpu.memory_space<vmem>>, vector<1x1x1x16x16xf32>,
    return
  }
  func.func @transform_0(%arg0: i32, %arg1: i32, %arg2: memref<48xi32, #tpu.memory_space<smem>>, %arg3: memref<8xi32, #tpu.memory_space<smem>>) -> (i32, i32, i32, i32) {
    %c0_i32 = arith.constant 0 : i32
    %c0_i32_0 = arith.constant 0 : i32
    %c0_i32_1 = arith.constant 0 : i32
    return %arg0, %arg1, %c0_i32, %c0_i32_0 : i32, i32, i32, i32
  }
  func.func @transform_1(%arg0: i32, %arg1: i32, %arg2: memref<48xi32, #tpu.memory_space<smem>>, %arg3: memref<8xi32, #tpu.memory_space<smem>>) -> (i32, i32, i32, i32, i32) {
    %c0_i32 = arith.constant 0 : i32
    %c0_i32_0 = arith.constant 0 : i32
    %c0_i32_1 = arith.constant 0 : i32
    %c0_i32_2 = arith.constant 0 : i32
    return %c0_i32, %arg0, %arg1, %c0_i32_0, %c0_i32_1 : i32, i32, i32, i32, i32
  }
}

</mosaic_0001>

<llo_original>
// kernel: tpu_custom_call.1
$region0: #{tpu_custom_call.1}
  #allocation0 [shape = 'u32[]', space=smem, size = 0x4, offset = 0x4, fixed_abs, tag = 'smem constant byte address 0x4 - core index']
  #allocation1 [shape = 'u32[72,128]{1,0:T(1,128)}', space=vmem, size = 0x9000, scoped, tag = 'internal scratch']
  #allocation2 [shape = 's32[1]{0}', space=sflag, size = 0x4, scoped, tag = 'scoped memory for tpu_custom_call.1']
  #allocation3 [shape = 'u8[512]{0}', space=smem, size = 0x200, scoped, tag = 'prefetched SMEM operand 0']
  #allocation4 [shape = 'u8[512]{0}', space=smem, size = 0x200, scoped, tag = 'prefetched SMEM operand 1']
  #allocation7 [shape = 's32[]', space=sflag, size = 0x4, offset = 0, fixed_abs, tag = 'sflag constant byte address 0x0 - dummy sync flag']
  %s0 = inlined_call_operand.vmem [shape: s32[48], index: 0, kind: input, shape index: {}]
  %s1 = inlined_call_operand.vmem [shape: s32[8], index: 1, kind: input, shape index: {}]
  %s2 = inlined_call_operand.vmem [shape: f32[2,12,18,18], index: 2, kind: input, shape index: {}]
  %s3 = inlined_call_operand.hbm [shape: f32[3,2,1,16,64], index: 3, kind: output, shape index: {}]
  %s4 = sld [smem:[#allocation0]]
  $region37: #{tpu_custom_call.1} parent=0
    _
  %s6 = ssub.s32 1, %s4
  %s7 = scalar_select 0, %s6, %s4
  %s9 = sshll.u32 %s0, 4
  %s10 = int_to_ptr.vmem [resolvable:$true] %s9
  %12 = dma.vmem_to_smem %s10, 16, [#allocation3], [#allocation2]
  %s14 = sshll.u32 %s1, 4
  %s15 = int_to_ptr.vmem [resolvable:$true] %s14
  %17 = dma.vmem_to_smem %s15, 16, [#allocation4], [#allocation2]
  %19 = dma.done [#allocation2], 32
  %20 = sfence
  $region1: #{tpu_custom_call.1} parent=0
    #allocation5 [shape = 'u8[49152]{0}', space=vmem, size = 0xc000, scoped, tag = 'output window, operand 0']
    #allocation6 [shape = 's32[2]{0}', space=sflag, size = 0x8, scoped, tag = 'scoped memory for tpu_custom_call.1']
    %21 = vsyncpa [#allocation6], 0
    %s22 = scalar_lea.sflag [#allocation6], 1
    %23 = vsyncpa %s22, 0
    loop: start=0, step=1, limit=4
    $region2: #{tpu_custom_call.1} parent=1 // loop_pre_header
      _
    $region3: #{tpu_custom_call.1} parent=1 // loop_header
      %s25 = sphi 0, %s29
      %p26 = scmp.ge.s32.totalorder %s25, 4
      %s32 = sphi 0, %s44
      %s33 = sphi 0, %s40
      %s34 = sphi 0, %s32
      %s35 = sphi 0, %s33
      %s36 = sphi 0, %s34
      %s37 = sphi 0, %s35
      %s49 = sphi 0, %s51
      %s52 = sphi 0, %s49
      %s53 = sphi 0, %s52
      %s69 = sphi 0, %s53
      %s77 = sphi 0, %s79
      %s80 = sphi 0, %s77
      %s81 = sphi 0, %s80
      %s97 = sphi 0, %s81
    $region4: #{tpu_custom_call.1} parent=1 // loop_header_branch
      %28 = sbr.rel (%p26) target = $region8
    $region5: #{tpu_custom_call.1} parent=1 // loop_body
      %s30 = ssub.s32 %s25, 1
      %s31 = ssub.s32 %s25, 2
      %s38 = sadd.s32 1, %s33
      %p39 = scmp.ge.s32.totalorder %s38, 1
      %s40 = scalar_select %p39, 0, %s38
      %s41 = sadd.s32 1, %s32
      %s42 = scalar_select %p39, %s41, %s32
      %p43 = scmp.ge.s32.totalorder %s42, 2
      %s44 = scalar_select %p43, 0, %s42
      %s45 = ssub.s32 %s32, %s44
      %s46 = ssub.s32 %s33, %s40
      %s47 = sor.u32 %s45, %s46
      %p48 = scmp.eq.s32.totalorder %s47, 0
      %s50 = sadd.s32 %s49, 1
      %s51 = scalar_select %p48, %s49, %s50
      %p54 = pneg %p48
      %p55 = scmp.eq.s32.totalorder %s25, 1
      %p56 = por %p54, %p55
      %p57 = scmp.ne.s32.totalorder %s49, %s52
      %p58 = scmp.eq.s32.totalorder %s25, 0
      %p59 = por %p57, %p58
      %p60 = scmp.ne.s32.totalorder %s49, %s52
      %p61 = scmp.eq.s32.totalorder %s30, 1
      %p62 = por %p60, %p61
      %p63 = scmp.ne.s32.totalorder %s52, %s53
      %p64 = scmp.eq.s32.totalorder %s30, 0
      %p65 = por %p63, %p64
      %p66 = scmp.ne.s32.totalorder %s52, %s53
      %p67 = scmp.eq.s32.totalorder %s31, 1
      %p68 = por %p66, %p67
      %p70 = scmp.ne.s32.totalorder %s53, %s69
      %p71 = scmp.eq.s32.totalorder %s31, 0
      %p72 = por %p70, %p71
      %s73 = ssub.s32 %s32, %s44
      %s74 = ssub.s32 %s33, %s40
      %s75 = sor.u32 %s73, %s74
      %p76 = scmp.eq.s32.totalorder %s75, 0
      %s78 = sadd.s32 %s77, 1
      %s79 = scalar_select %p76, %s77, %s78
      %p82 = pneg %p76
      %p83 = scmp.eq.s32.totalorder %s25, 1
      %p84 = por %p82, %p83
      %p85 = scmp.ne.s32.totalorder %s77, %s80
      %p86 = scmp.eq.s32.totalorder %s25, 0
      %p87 = por %p85, %p86
      %p88 = scmp.ne.s32.totalorder %s77, %s80
      %p89 = scmp.eq.s32.totalorder %s30, 1
      %p90 = por %p88, %p89
      %p91 = scmp.ne.s32.totalorder %s80, %s81
      %p92 = scmp.eq.s32.totalorder %s30, 0
      %p93 = por %p91, %p92
      %p94 = scmp.ne.s32.totalorder %s80, %s81
      %p95 = scmp.eq.s32.totalorder %s31, 1
      %p96 = por %p94, %p95
      %p98 = scmp.ne.s32.totalorder %s81, %s97
      %p99 = scmp.eq.s32.totalorder %s31, 0
      %p100 = por %p98, %p99
      %p101 = scmp.le.s32.totalorder 1, %s25
      %p102 = scmp.lt.s32.totalorder %s25, 3
      %p103 = pnand %p101, %p102
      %p104 = pneg %p103
      // Predicated region
      $region9: #{tpu_custom_call.1} parent=5 // pred_check
        _
      $region10: #{tpu_custom_call.1} parent=5 // pred_check_branch
        %106 = sbr.rel (%p103) target = $region12
      $region11: #{tpu_custom_call.1} parent=5 // pred_region
        %s107 = ssub.s32 %s25, 1
      $region12: #{tpu_custom_call.1} parent=5 // pred_fallthru
        _
      %p108 = scmp.lt.s32.totalorder %s25, 2
      // Predicated region
      $region13: #{tpu_custom_call.1} parent=5 // pred_check
        %p109 = pneg %p108
      $region14: #{tpu_custom_call.1} parent=5 // pred_check_branch
        %111 = sbr.rel (%p109) target = $region16
      $region15: #{tpu_custom_call.1} parent=5 // pred_region
        // Predicated region
        $region17: #{tpu_custom_call.1} parent=15 // pred_check
          %p112 = pneg %p59
        $region18: #{tpu_custom_call.1} parent=15 // pred_check_branch
          %114 = sbr.rel (%p112) target = $region20
        $region19: #{tpu_custom_call.1} parent=15 // pred_region
          %s115 = smul.u32 12, %s33
          %p116 = scmp.lt.s32.totalorder %s32, 1
          %s117 = scalar_select %p116, %s32, 1
          %p118 = scmp.lt.s32.totalorder %s115, 11
          %s119 = scalar_select %p118, %s115, 11
          %s120 = smul.addr %s119, 3
          %s121 = smul.addr %s117, 36
          %s122 = sadd.s32 %s120, %s121
          %s123 = smul.addr %s122, 8
          %s124 = scalar_lea.vmem %s2, %s123
          %s125 = smul.u32 12, %s33
        $region20: #{tpu_custom_call.1} parent=15 // pred_fallthru
          _
      $region16: #{tpu_custom_call.1} parent=5 // pred_fallthru
        _
      %p126 = scmp.le.s32.totalorder 1, %s25
      %p127 = scmp.lt.s32.totalorder %s25, 3
      %p128 = pnand %p126, %p127
      %p129 = pneg %p128
      // Predicated region
      $region21: #{tpu_custom_call.1} parent=5 // pred_check
        _
      $region22: #{tpu_custom_call.1} parent=5 // pred_check_branch
        %131 = sbr.rel (%p128) target = $region24
      $region23: #{tpu_custom_call.1} parent=5 // pred_region
        %s132 = ssub.s32 %s25, 1
        %s133 = smul.u32 12, %s35
        %p134 = scmp.lt.s32.totalorder %s34, 1
        %s135 = scalar_select %p134, %s34, 1
        %p136 = scmp.lt.s32.totalorder %s133, 11
        %s137 = scalar_select %p136, %s133, 11
        %s138 = smul.addr %s137, 3
        %s139 = smul.addr %s135, 36
        %s140 = sadd.s32 %s138, %s139
        %s141 = smul.addr %s140, 8
        %s142 = scalar_lea.vmem %s2, %s141
        %p143 = pneg %p65
        %p144 = pneg %p62
        %p145 = pneg %p93
        %p146 = pneg %p90
        %s147 = sand.u32 %s80, 1
        %s148 = scalar_lea.sflag [#allocation6], %s147
        %s149 = sand.u32 %s80, 1
        %s150 = smul.addr %s149, 48
        %s151 = scalar_lea.vmem [#allocation5], %s150
        %s152 = smul.u32 12, %s35
        %p153 = scmp.lt.s32.totalorder %s34, 1
        %s154 = scalar_select %p153, %s34, 1
        %p155 = scmp.lt.s32.totalorder %s152, 11
        %s156 = scalar_select %p155, %s152, 11
        %s157 = smul.addr %s156, 3
        %s158 = smul.addr %s154, 36
        %s159 = sadd.s32 %s157, %s158
        %s160 = smul.addr %s159, 8
        %s161 = scalar_lea.vmem %s2, %s160
        %s162 = smul.u32 12, %s35
        %s163 = smul.u32 %s35, 48
        %s164 = sadd.s32 %s163, 6
        %s165 = smul.u32 %s35, 8
        %s166 = sld [smem:[#allocation3 + %s163]]
        %s167 = smul.u32 %s166, 24
        %s168 = scalar_lea.vmem %s161, %s167
        %v169 = vld [vmem:[%s168 + $0x1] sm:$0xff]
        %v170 = vld [vmem:[%s168 + $0x9] sm:$0xff]
        %s171 = sadd.s32 %s163, 3
        %s172 = sld [smem:[#allocation3 + %s171]]
        %s173 = smul.u32 %s172, 24
        %s174 = scalar_lea.vmem %s161, %s173
        %v175 = vld [vmem:[%s174 + $0x1] sm:$0xff]
        %v176 = vld [vmem:[%s174 + $0x9] sm:$0xff]
        %v177 = vadd.f32 %v169, %v175
        %v178 = vadd.f32 %v170, %v176
        %181 = vrot.lane.b32.xlu0 %v177, 126
        %v182 = vpop.permute.xlu0 %181
        %183 = vrot.lane.b32.xlu0 %v178, 126
        %v184 = vpop.permute.xlu0 %183
        %vm187 = vcmask 130048
        %188 = vst.msk [vmem:[%s151] sm:$0xff] %vm187, %v182
        %189 = vst.msk [vmem:[%s151 + $0x8] sm:$0xff] %vm187, %v184
        %s190 = sadd.s32 %s163, 1
        %s191 = sld [smem:[#allocation3 + %s190]]
        %s192 = smul.u32 %s191, 24
        %s193 = scalar_lea.vmem %s161, %s192
        %v194 = vld [vmem:[%s193 + $0x1] sm:$0xff]
        %v195 = vld [vmem:[%s193 + $0x9] sm:$0xff]
        %s196 = sadd.s32 %s163, 4
        %s197 = sld [smem:[#allocation3 + %s196]]
        %s198 = smul.u32 %s197, 24
        %s199 = scalar_lea.vmem %s161, %s198
        %v200 = vld [vmem:[%s199 + $0x1] sm:$0xff]
        %v201 = vld [vmem:[%s199 + $0x9] sm:$0xff]
        %v202 = vadd.f32 %v194, %v200
        %v203 = vadd.f32 %v195, %v201
        %v204 = vld [vmem:[%s151] sm:$0xff]
        %v205 = vld [vmem:[%s151 + $0x8] sm:$0xff]
        %208 = vrot.lane.b32.xlu0 %v202, 1
        %v209 = vpop.permute.xlu0 %208
        %210 = vrot.lane.b32.xlu0 %v203, 1
        %v211 = vpop.permute.xlu0 %210
        %v214 = vadd.f32 %v204, %v209
        %v215 = vadd.f32 %v205, %v211
        %vm216 = vcmask 130056
        %217 = vst.msk [vmem:[%s151] sm:$0xff] %vm216, %v214
        %218 = vst.msk [vmem:[%s151 + $0x8] sm:$0xff] %vm216, %v215
        %s219 = sadd.s32 %s163, 2
        %s220 = sld [smem:[#allocation3 + %s219]]
        %s221 = smul.u32 %s220, 24
        %s222 = scalar_lea.vmem %s161, %s221
        %v223 = vld [vmem:[%s222 + $0x1] sm:$0xff]
        %v224 = vld [vmem:[%s222 + $0x9] sm:$0xff]
        %s225 = sadd.s32 %s163, 5
        %s226 = sld [smem:[#allocation3 + %s225]]
        %s227 = smul.u32 %s226, 24
        %s228 = scalar_lea.vmem %s161, %s227
        %v229 = vld [vmem:[%s228 + $0x1] sm:$0xff]
        %v230 = vld [vmem:[%s228 + $0x9] sm:$0xff]
        %v231 = vadd.f32 %v223, %v229
        %v232 = vadd.f32 %v224, %v230
        %v233 = vld [vmem:[%s151] sm:$0xff]
        %v234 = vld [vmem:[%s151 + $0x8] sm:$0xff]
        %237 = vrot.lane.b32.xlu0 %v231, 4
        %v238 = vpop.permute.xlu0 %237
        %239 = vrot.lane.b32.xlu0 %v232, 4
        %v240 = vpop.permute.xlu0 %239
        %v243 = vadd.f32 %v233, %v238
        %v244 = vadd.f32 %v234, %v240
        %vm245 = vcmask 130080
        %246 = vst.msk [vmem:[%s151] sm:$0xff] %vm245, %v243
        %247 = vst.msk [vmem:[%s151 + $0x8] sm:$0xff] %vm245, %v244
        %s248 = sld [smem:[#allocation3 + %s164]]
        %s249 = smul.u32 %s248, 24
        %s250 = scalar_lea.vmem %s161, %s249
        %v251 = vld [vmem:[%s250 + $0x2] sm:$0xff]
        %v252 = vld [vmem:[%s250 + $0xa] sm:$0xff]
        %s253 = sadd.s32 %s163, 9
        %s254 = sld [smem:[#allocation3 + %s253]]
        %s255 = smul.u32 %s254, 24
        %s256 = scalar_lea.vmem %s161, %s255
        %v257 = vld [vmem:[%s256 + $0x2] sm:$0xff]
        %v258 = vld [vmem:[%s256 + $0xa] sm:$0xff]
        %v259 = vadd.f32 %v251, %v257
        %v260 = vadd.f32 %v252, %v258
        %263 = vrot.lane.b32.xlu0 %v259, 127
        %v264 = vpop.permute.xlu0 %263
        %265 = vrot.lane.b32.xlu0 %v260, 127
        %v266 = vpop.permute.xlu0 %265
        %s269 = scalar_lea.vmem %s151, 16 [#allocation5]
        %270 = vst.msk [vmem:[%s269] sm:$0xff] %vm187, %v264
        %271 = vst.msk [vmem:[%s269 + $0x8] sm:$0xff] %vm187, %v266
        %s272 = sadd.s32 %s163, 7
        %s273 = sld [smem:[#allocation3 + %s272]]
        %s274 = smul.u32 %s273, 24
        %s275 = scalar_lea.vmem %s161, %s274
        %v276 = vld [vmem:[%s275] sm:$0xff]
        %v277 = vld [vmem:[%s275 + $0x8] sm:$0x7f]
        %s278 = sadd.s32 %s163, 10
        %s279 = sld [smem:[#allocation3 + %s278]]
        %s280 = smul.u32 %s279, 24
        %s281 = scalar_lea.vmem %s161, %s280
        %v282 = vld [vmem:[%s281] sm:$0xff]
        %v283 = vld [vmem:[%s281 + $0x8] sm:$0x7f]
        %v284 = vadd.f32 %v276, %v282
        %v285 = vadd.f32 %v277, %v283
        %v286 = vld [vmem:[%s269 + $0x1] sm:$0xff]
        %v287 = vld [vmem:[%s269 + $0x9] sm:$0x7f]
        %290 = vrot.lane.b32.xlu0 %v284, 127
        %v291 = vpop.permute.xlu0 %290
        %292 = vrot.lane.b32.xlu0 %v285, 127
        %v293 = vpop.permute.xlu0 %292
        %v296 = vadd.f32 %v286, %v291
        %v297 = vadd.f32 %v287, %v293
        %298 = vst.msk [vmem:[%s269 + $0x1] sm:$0xff] %vm187, %v296
        %vm299 = vcmask 129024
        %300 = vst.msk [vmem:[%s269 + $0x9] sm:$0x7f] %vm299, %v297
        %s301 = sadd.s32 %s163, 8
        %s302 = sld [smem:[#allocation3 + %s301]]
        %s303 = smul.u32 %s302, 24
        %s304 = scalar_lea.vmem %s161, %s303
        %v305 = vld [vmem:[%s304] sm:$0xff]
        %v306 = vld [vmem:[%s304 + $0x8] sm:$0xf]
        %s307 = sadd.s32 %s163, 11
        %s308 = sld [smem:[#allocation3 + %s307]]
        %s309 = smul.u32 %s308, 24
        %s310 = scalar_lea.vmem %s161, %s309
        %v311 = vld [vmem:[%s310] sm:$0xff]
        %v312 = vld [vmem:[%s310 + $0x8] sm:$0xf]
        %v313 = vadd.f32 %v305, %v311
        %v314 = vadd.f32 %v306, %v312
        %v315 = vld [vmem:[%s269 + $0x4] sm:$0xff]
        %v316 = vld [vmem:[%s269 + $0xc] sm:$0xf]
        %319 = vrot.lane.b32.xlu0 %v313, 127
        %v320 = vpop.permute.xlu0 %319
        %321 = vrot.lane.b32.xlu0 %v314, 127
        %v322 = vpop.permute.xlu0 %321
        %v325 = vadd.f32 %v315, %v320
        %v326 = vadd.f32 %v316, %v322
        %327 = vst.msk [vmem:[%s269 + $0x4] sm:$0xff] %vm187, %v325
        %vm328 = vcmask 125952
        %329 = vst.msk [vmem:[%s269 + $0xc] sm:$0xf] %vm328, %v326
        %s330 = sld [smem:[#allocation4 + %s165]]
        %s331 = smul.u32 %s330, 24
        %s332 = scalar_lea.vmem %s161, %s331
        %v333 = vld [vmem:[%s332 + $0x1] sm:$0xff]
        %v334 = vld [vmem:[%s332 + $0x9] sm:$0xff]
        %s335 = sadd.s32 %s165, 1
        %s336 = sld [smem:[#allocation4 + %s335]]
        %s337 = smul.u32 %s336, 24
        %s338 = scalar_lea.vmem %s161, %s337
        %v339 = vld [vmem:[%s338 + $0x1] sm:$0xff]
        %v340 = vld [vmem:[%s338 + $0x9] sm:$0xff]
        %v341 = vadd.f32 %v333, %v339
        %v342 = vadd.f32 %v334, %v340
        %345 = vrot.lane.b32.xlu0 %v341, 127
        %v346 = vpop.permute.xlu0 %345
        %347 = vrot.lane.b32.xlu0 %v342, 127
        %v348 = vpop.permute.xlu0 %347
        %s351 = scalar_lea.vmem %s151, 32 [#allocation5]
        %352 = vst.msk [vmem:[%s351] sm:$0xff] %vm187, %v346
        %353 = vst.msk [vmem:[%s351 + $0x8] sm:$0xff] %vm187, %v348
        %s354 = smul.u32 %s35, 4
        %s355 = sadd.s32 %s354, 1
        %s356 = smul.u32 %s355, 12
        %s357 = sadd.s32 %s356, 6
        %s358 = smul.u32 %s355, 2
        %s359 = sld [smem:[#allocation3 + %s356]]
        %s360 = sadd.s32 %s359, 3
        %s361 = smul.u32 %s360, 24
        %s362 = scalar_lea.vmem %s161, %s361
        %v363 = vld [vmem:[%s362 + $0x1] sm:$0xff]
        %v364 = vld [vmem:[%s362 + $0x9] sm:$0xff]
        %s365 = sadd.s32 %s356, 3
        %s366 = sld [smem:[#allocation3 + %s365]]
        %s367 = sadd.s32 %s366, 3
        %s368 = smul.u32 %s367, 24
        %s369 = scalar_lea.vmem %s161, %s368
        %v370 = vld [vmem:[%s369 + $0x1] sm:$0xff]
        %v371 = vld [vmem:[%s369 + $0x9] sm:$0xff]
        %v372 = vadd.f32 %v363, %v370
        %v373 = vadd.f32 %v364, %v371
        %376 = vrot.lane.b32.xlu0 %v372, 14
        %v377 = vpop.permute.xlu0 %376
        %378 = vrot.lane.b32.xlu0 %v373, 14
        %v379 = vpop.permute.xlu0 %378
        %vm382 = vcmask 261248
        %383 = vst.msk [vmem:[%s151] sm:$0xff] %vm382, %v377
        %384 = vst.msk [vmem:[%s151 + $0x8] sm:$0xff] %vm382, %v379
        %s385 = sadd.s32 %s356, 1
        %s386 = sld [smem:[#allocation3 + %s385]]
        %s387 = sadd.s32 %s386, 3
        %s388 = smul.u32 %s387, 24
        %s389 = scalar_lea.vmem %s161, %s388
        %v390 = vld [vmem:[%s389 + $0x1] sm:$0xff]
        %v391 = vld [vmem:[%s389 + $0x9] sm:$0xff]
        %s392 = sadd.s32 %s356, 4
        %s393 = sld [smem:[#allocation3 + %s392]]
        %s394 = sadd.s32 %s393, 3
        %s395 = smul.u32 %s394, 24
        %s396 = scalar_lea.vmem %s161, %s395
        %v397 = vld [vmem:[%s396 + $0x1] sm:$0xff]
        %v398 = vld [vmem:[%s396 + $0x9] sm:$0xff]
        %v399 = vadd.f32 %v390, %v397
        %v400 = vadd.f32 %v391, %v398
        %v401 = vld [vmem:[%s151] sm:$0xff]
        %v402 = vld [vmem:[%s151 + $0x8] sm:$0xff]
        %405 = vrot.lane.b32.xlu0 %v399, 17
        %v406 = vpop.permute.xlu0 %405
        %407 = vrot.lane.b32.xlu0 %v400, 17
        %v408 = vpop.permute.xlu0 %407
        %v411 = vadd.f32 %v401, %v406
        %v412 = vadd.f32 %v402, %v408
        %vm413 = vcmask 261256
        %414 = vst.msk [vmem:[%s151] sm:$0xff] %vm413, %v411
        %415 = vst.msk [vmem:[%s151 + $0x8] sm:$0xff] %vm413, %v412
        %s416 = sadd.s32 %s356, 2
        %s417 = sld [smem:[#allocation3 + %s416]]
        %s418 = sadd.s32 %s417, 3
        %s419 = smul.u32 %s418, 24
        %s420 = scalar_lea.vmem %s161, %s419
        %v421 = vld [vmem:[%s420 + $0x1] sm:$0xff]
        %v422 = vld [vmem:[%s420 + $0x9] sm:$0xff]
        %s423 = sadd.s32 %s356, 5
        %s424 = sld [smem:[#allocation3 + %s423]]
        %s425 = sadd.s32 %s424, 3
        %s426 = smul.u32 %s425, 24
        %s427 = scalar_lea.vmem %s161, %s426
        %v428 = vld [vmem:[%s427 + $0x1] sm:$0xff]
        %v429 = vld [vmem:[%s427 + $0x9] sm:$0xff]
        %v430 = vadd.f32 %v421, %v428
        %v431 = vadd.f32 %v422, %v429
        %v432 = vld [vmem:[%s151] sm:$0xff]
        %v433 = vld [vmem:[%s151 + $0x8] sm:$0xff]
        %436 = vrot.lane.b32.xlu0 %v430, 20
        %v437 = vpop.permute.xlu0 %436
        %438 = vrot.lane.b32.xlu0 %v431, 20
        %v439 = vpop.permute.xlu0 %438
        %v442 = vadd.f32 %v432, %v437
        %v443 = vadd.f32 %v433, %v439
        %vm444 = vcmask 261280
        %445 = vst.msk [vmem:[%s151] sm:$0xff] %vm444, %v442
        %446 = vst.msk [vmem:[%s151 + $0x8] sm:$0xff] %vm444, %v443
        %s447 = sld [smem:[#allocation3 + %s357]]
        %s448 = sadd.s32 %s447, 3
        %s449 = smul.u32 %s448, 24
        %s450 = scalar_lea.vmem %s161, %s449
        %v451 = vld [vmem:[%s450 + $0x2] sm:$0xff]
        %v452 = vld [vmem:[%s450 + $0xa] sm:$0xff]
        %s453 = sadd.s32 %s356, 9
        %s454 = sld [smem:[#allocation3 + %s453]]
        %s455 = sadd.s32 %s454, 3
        %s456 = smul.u32 %s455, 24
        %s457 = scalar_lea.vmem %s161, %s456
        %v458 = vld [vmem:[%s457 + $0x2] sm:$0xff]
        %v459 = vld [vmem:[%s457 + $0xa] sm:$0xff]
        %v460 = vadd.f32 %v451, %v458
        %v461 = vadd.f32 %v452, %v459
        %464 = vrot.lane.b32.xlu0 %v460, 15
        %v465 = vpop.permute.xlu0 %464
        %466 = vrot.lane.b32.xlu0 %v461, 15
        %v467 = vpop.permute.xlu0 %466
        %470 = vst.msk [vmem:[%s269] sm:$0xff] %vm382, %v465
        %471 = vst.msk [vmem:[%s269 + $0x8] sm:$0xff] %vm382, %v467
        %s472 = sadd.s32 %s356, 7
        %s473 = sld [smem:[#allocation3 + %s472]]
        %s474 = sadd.s32 %s473, 3
        %s475 = smul.u32 %s474, 24
        %s476 = scalar_lea.vmem %s161, %s475
        %v477 = vld [vmem:[%s476] sm:$0xff]
        %v478 = vld [vmem:[%s476 + $0x8] sm:$0x7f]
        %s479 = sadd.s32 %s356, 10
        %s480 = sld [smem:[#allocation3 + %s479]]
        %s481 = sadd.s32 %s480, 3
        %s482 = smul.u32 %s481, 24
        %s483 = scalar_lea.vmem %s161, %s482
        %v484 = vld [vmem:[%s483] sm:$0xff]
        %v485 = vld [vmem:[%s483 + $0x8] sm:$0x7f]
        %v486 = vadd.f32 %v477, %v484
        %v487 = vadd.f32 %v478, %v485
        %v488 = vld [vmem:[%s269 + $0x1] sm:$0xff]
        %v489 = vld [vmem:[%s269 + $0x9] sm:$0x7f]
        %492 = vrot.lane.b32.xlu0 %v486, 15
        %v493 = vpop.permute.xlu0 %492
        %494 = vrot.lane.b32.xlu0 %v487, 15
        %v495 = vpop.permute.xlu0 %494
        %v498 = vadd.f32 %v488, %v493
        %v499 = vadd.f32 %v489, %v495
        %500 = vst.msk [vmem:[%s269 + $0x1] sm:$0xff] %vm382, %v498
        %vm501 = vcmask 260224
        %502 = vst.msk [vmem:[%s269 + $0x9] sm:$0x7f] %vm501, %v499
        %s503 = sadd.s32 %s356, 8
        %s504 = sld [smem:[#allocation3 + %s503]]
        %s505 = sadd.s32 %s504, 3
        %s506 = smul.u32 %s505, 24
        %s507 = scalar_lea.vmem %s161, %s506
        %v508 = vld [vmem:[%s507] sm:$0xff]
        %v509 = vld [vmem:[%s507 + $0x8] sm:$0xf]
        %s510 = sadd.s32 %s356, 11
        %s511 = sld [smem:[#allocation3 + %s510]]
        %s512 = sadd.s32 %s511, 3
        %s513 = smul.u32 %s512, 24
        %s514 = scalar_lea.vmem %s161, %s513
        %v515 = vld [vmem:[%s514] sm:$0xff]
        %v516 = vld [vmem:[%s514 + $0x8] sm:$0xf]
        %v517 = vadd.f32 %v508, %v515
        %v518 = vadd.f32 %v509, %v516
        %v519 = vld [vmem:[%s269 + $0x4] sm:$0xff]
        %v520 = vld [vmem:[%s269 + $0xc] sm:$0xf]
        %523 = vrot.lane.b32.xlu0 %v517, 15
        %v524 = vpop.permute.xlu0 %523
        %525 = vrot.lane.b32.xlu0 %v518, 15
        %v526 = vpop.permute.xlu0 %525
        %v529 = vadd.f32 %v519, %v524
        %v530 = vadd.f32 %v520, %v526
        %531 = vst.msk [vmem:[%s269 + $0x4] sm:$0xff] %vm382, %v529
        %vm532 = vcmask 257152
        %533 = vst.msk [vmem:[%s269 + $0xc] sm:$0xf] %vm532, %v530
        %s534 = sld [smem:[#allocation4 + %s358]]
        %s535 = sadd.s32 %s534, 3
        %s536 = smul.u32 %s535, 24
        %s537 = scalar_lea.vmem %s161, %s536
        %v538 = vld [vmem:[%s537 + $0x1] sm:$0xff]
        %v539 = vld [vmem:[%s537 + $0x9] sm:$0xff]
        %s540 = sadd.s32 %s358, 1
        %s541 = sld [smem:[#allocation4 + %s540]]
        %s542 = sadd.s32 %s541, 3
        %s543 = smul.u32 %s542, 24
        %s544 = scalar_lea.vmem %s161, %s543
        %v545 = vld [vmem:[%s544 + $0x1] sm:$0xff]
        %v546 = vld [vmem:[%s544 + $0x9] sm:$0xff]
        %v547 = vadd.f32 %v538, %v545
        %v548 = vadd.f32 %v539, %v546
        %551 = vrot.lane.b32.xlu0 %v547, 15
        %v552 = vpop.permute.xlu0 %551
        %553 = vrot.lane.b32.xlu0 %v548, 15
        %v554 = vpop.permute.xlu0 %553
        %557 = vst.msk [vmem:[%s351] sm:$0xff] %vm382, %v552
        %558 = vst.msk [vmem:[%s351 + $0x8] sm:$0xff] %vm382, %v554
        %s559 = sadd.s32 %s354, 2
        %s560 = smul.u32 %s559, 12
        %s561 = sadd.s32 %s560, 6
        %s562 = smul.u32 %s559, 2
        %s563 = sld [smem:[#allocation3 + %s560]]
        %s564 = sadd.s32 %s563, 6
        %s565 = smul.u32 %s564, 24
        %s566 = scalar_lea.vmem %s161, %s565
        %v567 = vld [vmem:[%s566 + $0x1] sm:$0xff]
        %v568 = vld [vmem:[%s566 + $0x9] sm:$0xff]
        %s569 = sadd.s32 %s560, 3
        %s570 = sld [smem:[#allocation3 + %s569]]
        %s571 = sadd.s32 %s570, 6
        %s572 = smul.u32 %s571, 24
        %s573 = scalar_lea.vmem %s161, %s572
        %v574 = vld [vmem:[%s573 + $0x1] sm:$0xff]
        %v575 = vld [vmem:[%s573 + $0x9] sm:$0xff]
        %v576 = vadd.f32 %v567, %v574
        %v577 = vadd.f32 %v568, %v575
        %580 = vrot.lane.b32.xlu0 %v576, 30
        %v581 = vpop.permute.xlu0 %580
        %582 = vrot.lane.b32.xlu0 %v577, 30
        %v583 = vpop.permute.xlu0 %582
        %vm586 = vcmask 392448
        %587 = vst.msk [vmem:[%s151] sm:$0xff] %vm586, %v581
        %588 = vst.msk [vmem:[%s151 + $0x8] sm:$0xff] %vm586, %v583
        %s589 = sadd.s32 %s560, 1
        %s590 = sld [smem:[#allocation3 + %s589]]
        %s591 = sadd.s32 %s590, 6
        %s592 = smul.u32 %s591, 24
        %s593 = scalar_lea.vmem %s161, %s592
        %v594 = vld [vmem:[%s593 + $0x1] sm:$0xff]
        %v595 = vld [vmem:[%s593 + $0x9] sm:$0xff]
        %s596 = sadd.s32 %s560, 4
        %s597 = sld [smem:[#allocation3 + %s596]]
        %s598 = sadd.s32 %s597, 6
        %s599 = smul.u32 %s598, 24
        %s600 = scalar_lea.vmem %s161, %s599
        %v601 = vld [vmem:[%s600 + $0x1] sm:$0xff]
        %v602 = vld [vmem:[%s600 + $0x9] sm:$0xff]
        %v603 = vadd.f32 %v594, %v601
        %v604 = vadd.f32 %v595, %v602
        %v605 = vld [vmem:[%s151] sm:$0xff]
        %v606 = vld [vmem:[%s151 + $0x8] sm:$0xff]
        %609 = vrot.lane.b32.xlu0 %v603, 33
        %v610 = vpop.permute.xlu0 %609
        %611 = vrot.lane.b32.xlu0 %v604, 33
        %v612 = vpop.permute.xlu0 %611
        %v615 = vadd.f32 %v605, %v610
        %v616 = vadd.f32 %v606, %v612
        %vm617 = vcmask 392456
        %618 = vst.msk [vmem:[%s151] sm:$0xff] %vm617, %v615
        %619 = vst.msk [vmem:[%s151 + $0x8] sm:$0xff] %vm617, %v616
        %s620 = sadd.s32 %s560, 2
        %s621 = sld [smem:[#allocation3 + %s620]]
        %s622 = sadd.s32 %s621, 6
        %s623 = smul.u32 %s622, 24
        %s624 = scalar_lea.vmem %s161, %s623
        %v625 = vld [vmem:[%s624 + $0x1] sm:$0xff]
        %v626 = vld [vmem:[%s624 + $0x9] sm:$0xff]
        %s627 = sadd.s32 %s560, 5
        %s628 = sld [smem:[#allocation3 + %s627]]
        %s629 = sadd.s32 %s628, 6
        %s630 = smul.u32 %s629, 24
        %s631 = scalar_lea.vmem %s161, %s630
        %v632 = vld [vmem:[%s631 + $0x1] sm:$0xff]
        %v633 = vld [vmem:[%s631 + $0x9] sm:$0xff]
        %v634 = vadd.f32 %v625, %v632
        %v635 = vadd.f32 %v626, %v633
        %v636 = vld [vmem:[%s151] sm:$0xff]
        %v637 = vld [vmem:[%s151 + $0x8] sm:$0xff]
        %640 = vrot.lane.b32.xlu0 %v634, 36
        %v641 = vpop.permute.xlu0 %640
        %642 = vrot.lane.b32.xlu0 %v635, 36
        %v643 = vpop.permute.xlu0 %642
        %v646 = vadd.f32 %v636, %v641
        %v647 = vadd.f32 %v637, %v643
        %vm648 = vcmask 392480
        %649 = vst.msk [vmem:[%s151] sm:$0xff] %vm648, %v646
        %650 = vst.msk [vmem:[%s151 + $0x8] sm:$0xff] %vm648, %v647
        %s651 = sld [smem:[#allocation3 + %s561]]
        %s652 = sadd.s32 %s651, 6
        %s653 = smul.u32 %s652, 24
        %s654 = scalar_lea.vmem %s161, %s653
        %v655 = vld [vmem:[%s654 + $0x2] sm:$0xff]
        %v656 = vld [vmem:[%s654 + $0xa] sm:$0xff]
        %s657 = sadd.s32 %s560, 9
        %s658 = sld [smem:[#allocation3 + %s657]]
        %s659 = sadd.s32 %s658, 6
        %s660 = smul.u32 %s659, 24
        %s661 = scalar_lea.vmem %s161, %s660
        %v662 = vld [vmem:[%s661 + $0x2] sm:$0xff]
        %v663 = vld [vmem:[%s661 + $0xa] sm:$0xff]
        %v664 = vadd.f32 %v655, %v662
        %v665 = vadd.f32 %v656, %v663
        %668 = vrot.lane.b32.xlu0 %v664, 31
        %v669 = vpop.permute.xlu0 %668
        %670 = vrot.lane.b32.xlu0 %v665, 31
        %v671 = vpop.permute.xlu0 %670
        %674 = vst.msk [vmem:[%s269] sm:$0xff] %vm586, %v669
        %675 = vst.msk [vmem:[%s269 + $0x8] sm:$0xff] %vm586, %v671
        %s676 = sadd.s32 %s560, 7
        %s677 = sld [smem:[#allocation3 + %s676]]
        %s678 = sadd.s32 %s677, 6
        %s679 = smul.u32 %s678, 24
        %s680 = scalar_lea.vmem %s161, %s679
        %v681 = vld [vmem:[%s680] sm:$0xff]
        %v682 = vld [vmem:[%s680 + $0x8] sm:$0x7f]
        %s683 = sadd.s32 %s560, 10
        %s684 = sld [smem:[#allocation3 + %s683]]
        %s685 = sadd.s32 %s684, 6
        %s686 = smul.u32 %s685, 24
        %s687 = scalar_lea.vmem %s161, %s686
        %v688 = vld [vmem:[%s687] sm:$0xff]
        %v689 = vld [vmem:[%s687 + $0x8] sm:$0x7f]
        %v690 = vadd.f32 %v681, %v688
        %v691 = vadd.f32 %v682, %v689
        %v692 = vld [vmem:[%s269 + $0x1] sm:$0xff]
        %v693 = vld [vmem:[%s269 + $0x9] sm:$0x7f]
        %696 = vrot.lane.b32.xlu0 %v690, 31
        %v697 = vpop.permute.xlu0 %696
        %698 = vrot.lane.b32.xlu0 %v691, 31
        %v699 = vpop.permute.xlu0 %698
        %v702 = vadd.f32 %v692, %v697
        %v703 = vadd.f32 %v693, %v699
        %704 = vst.msk [vmem:[%s269 + $0x1] sm:$0xff] %vm586, %v702
        %vm705 = vcmask 391424
        %706 = vst.msk [vmem:[%s269 + $0x9] sm:$0x7f] %vm705, %v703
        %s707 = sadd.s32 %s560, 8
        %s708 = sld [smem:[#allocation3 + %s707]]
        %s709 = sadd.s32 %s708, 6
        %s710 = smul.u32 %s709, 24
        %s711 = scalar_lea.vmem %s161, %s710
        %v712 = vld [vmem:[%s711] sm:$0xff]
        %v713 = vld [vmem:[%s711 + $0x8] sm:$0xf]
        %s714 = sadd.s32 %s560, 11
        %s715 = sld [smem:[#allocation3 + %s714]]
        %s716 = sadd.s32 %s715, 6
        %s717 = smul.u32 %s716, 24
        %s718 = scalar_lea.vmem %s161, %s717
        %v719 = vld [vmem:[%s718] sm:$0xff]
        %v720 = vld [vmem:[%s718 + $0x8] sm:$0xf]
        %v721 = vadd.f32 %v712, %v719
        %v722 = vadd.f32 %v713, %v720
        %v723 = vld [vmem:[%s269 + $0x4] sm:$0xff]
        %v724 = vld [vmem:[%s269 + $0xc] sm:$0xf]
        %727 = vrot.lane.b32.xlu0 %v721, 31
        %v728 = vpop.permute.xlu0 %727
        %729 = vrot.lane.b32.xlu0 %v722, 31
        %v730 = vpop.permute.xlu0 %729
        %v733 = vadd.f32 %v723, %v728
        %v734 = vadd.f32 %v724, %v730
        %735 = vst.msk [vmem:[%s269 + $0x4] sm:$0xff] %vm586, %v733
        %vm736 = vcmask 388352
        %737 = vst.msk [vmem:[%s269 + $0xc] sm:$0xf] %vm736, %v734
        %s738 = sld [smem:[#allocation4 + %s562]]
        %s739 = sadd.s32 %s738, 6
        %s740 = smul.u32 %s739, 24
        %s741 = scalar_lea.vmem %s161, %s740
        %v742 = vld [vmem:[%s741 + $0x1] sm:$0xff]
        %v743 = vld [vmem:[%s741 + $0x9] sm:$0xff]
        %s744 = sadd.s32 %s562, 1
        %s745 = sld [smem:[#allocation4 + %s744]]
        %s746 = sadd.s32 %s745, 6
        %s747 = smul.u32 %s746, 24
        %s748 = scalar_lea.vmem %s161, %s747
        %v749 = vld [vmem:[%s748 + $0x1] sm:$0xff]
        %v750 = vld [vmem:[%s748 + $0x9] sm:$0xff]
        %v751 = vadd.f32 %v742, %v749
        %v752 = vadd.f32 %v743, %v750
        %755 = vrot.lane.b32.xlu0 %v751, 31
        %v756 = vpop.permute.xlu0 %755
        %757 = vrot.lane.b32.xlu0 %v752, 31
        %v758 = vpop.permute.xlu0 %757
        %761 = vst.msk [vmem:[%s351] sm:$0xff] %vm586, %v756
        %762 = vst.msk [vmem:[%s351 + $0x8] sm:$0xff] %vm586, %v758
        %s763 = sadd.s32 %s354, 3
        %s764 = smul.u32 %s763, 12
        %s765 = sadd.s32 %s764, 6
        %s766 = smul.u32 %s763, 2
        %s767 = sld [smem:[#allocation3 + %s764]]
        %s768 = sadd.s32 %s767, 9
        %s769 = smul.u32 %s768, 24
        %s770 = scalar_lea.vmem %s161, %s769
        %v771 = vld [vmem:[%s770 + $0x1] sm:$0xff]
        %v772 = vld [vmem:[%s770 + $0x9] sm:$0xff]
        %s773 = sadd.s32 %s764, 3
        %s774 = sld [smem:[#allocation3 + %s773]]
        %s775 = sadd.s32 %s774, 9
        %s776 = smul.u32 %s775, 24
        %s777 = scalar_lea.vmem %s161, %s776
        %v778 = vld [vmem:[%s777 + $0x1] sm:$0xff]
        %v779 = vld [vmem:[%s777 + $0x9] sm:$0xff]
        %v780 = vadd.f32 %v771, %v778
        %v781 = vadd.f32 %v772, %v779
        %784 = vrot.lane.b32.xlu0 %v780, 46
        %v785 = vpop.permute.xlu0 %784
        %786 = vrot.lane.b32.xlu0 %v781, 46
        %v787 = vpop.permute.xlu0 %786
        %vm790 = vcmask 523648
        %791 = vst.msk [vmem:[%s151] sm:$0xff] %vm790, %v785
        %792 = vst.msk [vmem:[%s151 + $0x8] sm:$0xff] %vm790, %v787
        %s793 = sadd.s32 %s764, 1
        %s794 = sld [smem:[#allocation3 + %s793]]
        %s795 = sadd.s32 %s794, 9
        %s796 = smul.u32 %s795, 24
        %s797 = scalar_lea.vmem %s161, %s796
        %v798 = vld [vmem:[%s797 + $0x1] sm:$0xff]
        %v799 = vld [vmem:[%s797 + $0x9] sm:$0xff]
        %s800 = sadd.s32 %s764, 4
        %s801 = sld [smem:[#allocation3 + %s800]]
        %s802 = sadd.s32 %s801, 9
        %s803 = smul.u32 %s802, 24
        %s804 = scalar_lea.vmem %s161, %s803
        %v805 = vld [vmem:[%s804 + $0x1] sm:$0xff]
        %v806 = vld [vmem:[%s804 + $0x9] sm:$0xff]
        %v807 = vadd.f32 %v798, %v805
        %v808 = vadd.f32 %v799, %v806
        %v809 = vld [vmem:[%s151] sm:$0xff]
        %v810 = vld [vmem:[%s151 + $0x8] sm:$0xff]
        %813 = vrot.lane.b32.xlu0 %v807, 49
        %v814 = vpop.permute.xlu0 %813
        %815 = vrot.lane.b32.xlu0 %v808, 49
        %v816 = vpop.permute.xlu0 %815
        %v819 = vadd.f32 %v809, %v814
        %v820 = vadd.f32 %v810, %v816
        %vm821 = vcmask 523656
        %822 = vst.msk [vmem:[%s151] sm:$0xff] %vm821, %v819
        %823 = vst.msk [vmem:[%s151 + $0x8] sm:$0xff] %vm821, %v820
        %s824 = sadd.s32 %s764, 2
        %s825 = sld [smem:[#allocation3 + %s824]]
        %s826 = sadd.s32 %s825, 9
        %s827 = smul.u32 %s826, 24
        %s828 = scalar_lea.vmem %s161, %s827
        %v829 = vld [vmem:[%s828 + $0x1] sm:$0xff]
        %v830 = vld [vmem:[%s828 + $0x9] sm:$0xff]
        %s831 = sadd.s32 %s764, 5
        %s832 = sld [smem:[#allocation3 + %s831]]
        %s833 = sadd.s32 %s832, 9
        %s834 = smul.u32 %s833, 24
        %s835 = scalar_lea.vmem %s161, %s834
        %v836 = vld [vmem:[%s835 + $0x1] sm:$0xff]
        %v837 = vld [vmem:[%s835 + $0x9] sm:$0xff]
        %v838 = vadd.f32 %v829, %v836
        %v839 = vadd.f32 %v830, %v837
        %v840 = vld [vmem:[%s151] sm:$0xff]
        %v841 = vld [vmem:[%s151 + $0x8] sm:$0xff]
        %844 = vrot.lane.b32.xlu0 %v838, 52
        %v845 = vpop.permute.xlu0 %844
        %846 = vrot.lane.b32.xlu0 %v839, 52
        %v847 = vpop.permute.xlu0 %846
        %v850 = vadd.f32 %v840, %v845
        %v851 = vadd.f32 %v841, %v847
        %vm852 = vcmask 523680
        %853 = vst.msk [vmem:[%s151] sm:$0xff] %vm852, %v850
        %854 = vst.msk [vmem:[%s151 + $0x8] sm:$0xff] %vm852, %v851
        %s855 = sld [smem:[#allocation3 + %s765]]
        %s856 = sadd.s32 %s855, 9
        %s857 = smul.u32 %s856, 24
        %s858 = scalar_lea.vmem %s161, %s857
        %v859 = vld [vmem:[%s858 + $0x2] sm:$0xff]
        %v860 = vld [vmem:[%s858 + $0xa] sm:$0xff]
        %s861 = sadd.s32 %s764, 9
        %s862 = sld [smem:[#allocation3 + %s861]]
        %s863 = sadd.s32 %s862, 9
        %s864 = smul.u32 %s863, 24
        %s865 = scalar_lea.vmem %s161, %s864
        %v866 = vld [vmem:[%s865 + $0x2] sm:$0xff]
        %v867 = vld [vmem:[%s865 + $0xa] sm:$0xff]
        %v868 = vadd.f32 %v859, %v866
        %v869 = vadd.f32 %v860, %v867
        %872 = vrot.lane.b32.xlu0 %v868, 47
        %v873 = vpop.permute.xlu0 %872
        %874 = vrot.lane.b32.xlu0 %v869, 47
        %v875 = vpop.permute.xlu0 %874
        %878 = vst.msk [vmem:[%s269] sm:$0xff] %vm790, %v873
        %879 = vst.msk [vmem:[%s269 + $0x8] sm:$0xff] %vm790, %v875
        %s880 = sadd.s32 %s764, 7
        %s881 = sld [smem:[#allocation3 + %s880]]
        %s882 = sadd.s32 %s881, 9
        %s883 = smul.u32 %s882, 24
        %s884 = scalar_lea.vmem %s161, %s883
        %v885 = vld [vmem:[%s884] sm:$0xff]
        %v886 = vld [vmem:[%s884 + $0x8] sm:$0x7f]
        %s887 = sadd.s32 %s764, 10
        %s888 = sld [smem:[#allocation3 + %s887]]
        %s889 = sadd.s32 %s888, 9
        %s890 = smul.u32 %s889, 24
        %s891 = scalar_lea.vmem %s161, %s890
        %v892 = vld [vmem:[%s891] sm:$0xff]
        %v893 = vld [vmem:[%s891 + $0x8] sm:$0x7f]
        %v894 = vadd.f32 %v885, %v892
        %v895 = vadd.f32 %v886, %v893
        %v896 = vld [vmem:[%s269 + $0x1] sm:$0xff]
        %v897 = vld [vmem:[%s269 + $0x9] sm:$0x7f]
        %900 = vrot.lane.b32.xlu0 %v894, 47
        %v901 = vpop.permute.xlu0 %900
        %902 = vrot.lane.b32.xlu0 %v895, 47
        %v903 = vpop.permute.xlu0 %902
        %v906 = vadd.f32 %v896, %v901
        %v907 = vadd.f32 %v897, %v903
        %908 = vst.msk [vmem:[%s269 + $0x1] sm:$0xff] %vm790, %v906
        %vm909 = vcmask 522624
        %910 = vst.msk [vmem:[%s269 + $0x9] sm:$0x7f] %vm909, %v907
        %s911 = sadd.s32 %s764, 8
        %s912 = sld [smem:[#allocation3 + %s911]]
        %s913 = sadd.s32 %s912, 9
        %s914 = smul.u32 %s913, 24
        %s915 = scalar_lea.vmem %s161, %s914
        %v916 = vld [vmem:[%s915] sm:$0xff]
        %v917 = vld [vmem:[%s915 + $0x8] sm:$0xf]
        %s918 = sadd.s32 %s764, 11
        %s919 = sld [smem:[#allocation3 + %s918]]
        %s920 = sadd.s32 %s919, 9
        %s921 = smul.u32 %s920, 24
        %s922 = scalar_lea.vmem %s161, %s921
        %v923 = vld [vmem:[%s922] sm:$0xff]
        %v924 = vld [vmem:[%s922 + $0x8] sm:$0xf]
        %v925 = vadd.f32 %v916, %v923
        %v926 = vadd.f32 %v917, %v924
        %v927 = vld [vmem:[%s269 + $0x4] sm:$0xff]
        %v928 = vld [vmem:[%s269 + $0xc] sm:$0xf]
        %931 = vrot.lane.b32.xlu0 %v925, 47
        %v932 = vpop.permute.xlu0 %931
        %933 = vrot.lane.b32.xlu0 %v926, 47
        %v934 = vpop.permute.xlu0 %933
        %v937 = vadd.f32 %v927, %v932
        %v938 = vadd.f32 %v928, %v934
        %939 = vst.msk [vmem:[%s269 + $0x4] sm:$0xff] %vm790, %v937
        %vm940 = vcmask 519552
        %941 = vst.msk [vmem:[%s269 + $0xc] sm:$0xf] %vm940, %v938
        %s942 = sld [smem:[#allocation4 + %s766]]
        %s943 = sadd.s32 %s942, 9
        %s944 = smul.u32 %s943, 24
        %s945 = scalar_lea.vmem %s161, %s944
        %v946 = vld [vmem:[%s945 + $0x1] sm:$0xff]
        %v947 = vld [vmem:[%s945 + $0x9] sm:$0xff]
        %s948 = sadd.s32 %s766, 1
        %s949 = sld [smem:[#allocation4 + %s948]]
        %s950 = sadd.s32 %s949, 9
        %s951 = smul.u32 %s950, 24
        %s952 = scalar_lea.vmem %s161, %s951
        %v953 = vld [vmem:[%s952 + $0x1] sm:$0xff]
        %v954 = vld [vmem:[%s952 + $0x9] sm:$0xff]
        %v955 = vadd.f32 %v946, %v953
        %v956 = vadd.f32 %v947, %v954
        %959 = vrot.lane.b32.xlu0 %v955, 47
        %v960 = vpop.permute.xlu0 %959
        %961 = vrot.lane.b32.xlu0 %v956, 47
        %v962 = vpop.permute.xlu0 %961
        %965 = vst.msk [vmem:[%s351] sm:$0xff] %vm790, %v960
        %966 = vst.msk [vmem:[%s351 + $0x8] sm:$0xff] %vm790, %v962
        %s967 = sand.u32 %s80, 1
        %s968 = scalar_lea.sflag [#allocation6], %s967
        %s969 = sand.u32 %s80, 1
        %s970 = smul.addr %s969, 48
        %s971 = scalar_lea.vmem [#allocation5], %s970
        // Predicated region
        $region25: #{tpu_custom_call.1} parent=23 // pred_check
          %p972 = pneg %p90
        $region26: #{tpu_custom_call.1} parent=23 // pred_check_branch
          %974 = sbr.rel (%p972) target = $region28
        $region27: #{tpu_custom_call.1} parent=23 // pred_region
          #allocation8 [shape = 'u32[6]{0}', space=smem, size = 0x18, scoped, tag = 'DMA stride descriptor']
          %976 = vsyncadd %s968, 0
          %s977 = smul.addr %s35, 2
          %s978 = smul.addr %s34, 2
          %s979 = sadd.s32 %s977, %s978
          %s980 = smul.addr %s979, 8
          %s981 = scalar_lea.hbm %s3, %s980
          %s983 = sshll.u32 1, 14
          %s984 = sxor.u32 4294967295, %s983
          %s987 = sshll.u32 7, 18
          %s988 = sxor.u32 4294967295, %s987
          %s989 = sand.u32 0, %s988
          %s991 = sor.u32 %s989, 0
          %s992 = sshll.u32 %s971, 4
          %s993 = int_to_ptr.vmem [resolvable:$true] %s992
          %s994 = sshll.u32 %s981, 4
          %s995 = int_to_ptr.hbm [resolvable:$true] %s994
          %1001 = sst [smem:[#allocation8]] 256
          %s1002 = scalar_lea.smem [#allocation8], 1
          %1003 = sst [smem:[%s1002]] 512
          %s1004 = scalar_lea.smem [#allocation8], 2
          %1005 = sst [smem:[%s1004]] 2
          %s1006 = scalar_lea.smem [#allocation8], 3
          %1007 = sst [smem:[%s1006]] 128
          %s1008 = scalar_lea.smem [#allocation8], 4
          %1009 = sst [smem:[%s1008]] 128
          %s1010 = scalar_lea.smem [#allocation8], 5
          %1011 = sst [smem:[%s1010]] 8
          %1013 = dma.general %s993, 768, %s995, %s968, [#allocation7], [#allocation8], %s991, 0
        $region28: #{tpu_custom_call.1} parent=23 // pred_fallthru
          _
      $region24: #{tpu_custom_call.1} parent=5 // pred_fallthru
        _
      %p1014 = scmp.le.s32.totalorder 2, %s25
      // Predicated region
      $region29: #{tpu_custom_call.1} parent=5 // pred_check
        %p1015 = pneg %p1014
      $region30: #{tpu_custom_call.1} parent=5 // pred_check_branch
        %1017 = sbr.rel (%p1015) target = $region32
      $region31: #{tpu_custom_call.1} parent=5 // pred_region
        %s1018 = ssub.s32 %s25, 2
        // Predicated region
        $region33: #{tpu_custom_call.1} parent=31 // pred_check
          %p1019 = pneg %p96
        $region34: #{tpu_custom_call.1} parent=31 // pred_check_branch
          %1021 = sbr.rel (%p1019) target = $region36
        $region35: #{tpu_custom_call.1} parent=31 // pred_region
          %s1022 = sand.u32 %s81, 1
          %s1023 = scalar_lea.sflag [#allocation6], %s1022
          %s1024 = sand.u32 %s81, 1
          %s1025 = smul.addr %s1024, 48
          %s1026 = scalar_lea.vmem [#allocation5], %s1025
          %1028 = dma.done %s1023, 768
        $region36: #{tpu_custom_call.1} parent=31 // pred_fallthru
          _
      $region32: #{tpu_custom_call.1} parent=5 // pred_fallthru
        _
    $region6: #{tpu_custom_call.1} parent=1 // loop_footer
      %s29 = sadd.s32 1, %s25
    $region7: #{tpu_custom_call.1} parent=1 // loop_footer_branch
      %24 = sbr.rel target = $region3
    $region8: #{tpu_custom_call.1} parent=1 // loop_exit
      _
    %1029 = vsyncpa [#allocation6], 1
    %s1030 = scalar_lea.sflag [#allocation6], 1
    %1031 = vsyncpa %s1030, 1

</llo_original>
